<compile_context>
chip_gen: v7x
topology: tpu7x:2x2x1
jax: 0.10.0
libtpu: 0.0.40
codegen_flags: <defaults>
</compile_context>

<pallas_src>
import jax
import jax.numpy as jnp
from jax import lax
from jax.experimental import pallas as pl
from jax.experimental.pallas import tpu as pltpu


HEADS = 4
DIM_HEAD = 32                     # MultiheadAttention embed_dim
HEAD_DIM = DIM_HEAD // HEADS      # per-head dim = 8
PROJ_HIDDEN = 40                  # hidden width of proj_q / proj_k / proj_v


def _make_kernel(tn: int, num_q_tiles: int, heads: int):
    def kernel(x_ref, wq1_ref, wq2_ref, bq_ref,
               wkv1_ref, wkv2_ref, bkv_ref, wo_ref, bo_ref,
               o_ref, kh_s, vh_s, attn_s):
        E = wq2_ref.shape[0]          # embed dim (dim_head)
        dh = E // heads               # per-head dim
        nq = pl.program_id(1)

        # --- K / V path: once per batch element, resident across q-tiles.
        # Stacked first layer [80, Dq] and block-diagonal folded second layer
        # [2E, 80] (in_proj already folded in) -> 2 matmuls total.
        @pl.when(nq == 0)
        def _():
            xf = x_ref[0]                                              # [Dq, N]
            hkv = jnp.maximum(
                jnp.dot(wkv1_ref[...], xf,
                        preferred_element_type=jnp.float32), 0.0)      # [80, N]
            kv = (jnp.dot(wkv2_ref[...], hkv,
                          preferred_element_type=jnp.float32)
                  + bkv_ref[...])                                      # [2E, N]
            kh_s[...] = kv[:E]
            vh_s[...] = kv[E:]

        # --- Q path for this query tile (sliced from the resident x slab).
        if num_q_tiles == 1:
            xq = x_ref[0]                                              # [Dq, N]
        else:
            start = pl.multiple_of(nq * tn, tn)                        # tn % 128 == 0
            xq = x_ref[0, :, pl.ds(start, tn)]                         # [Dq, tn]
        hq = jnp.maximum(
            jnp.dot(wq1_ref[...], xq, preferred_element_type=jnp.float32), 0.0)
        # in_proj + 1/sqrt(dh) scale are folded into wq2/bq.
        qh = (jnp.dot(wq2_ref[...], hq, preferred_element_type=jnp.float32)
              + bq_ref[...])                                           # [E, tn]

        kh = kh_s[...]                                                 # [E, N]
        vh = vh_s[...]                                                 # [E, N]

        for h in range(heads):
            r0, r1 = h * dh, (h + 1) * dh
            # s[m, n] = sum_d k[d, m] * q[d, n] -> keys on sublanes, queries on lanes.
            s = lax.dot_general(kh[r0:r1, :], qh[r0:r1, :],
                                (((0,), (0,)), ((), ())),
                                preferred_element_type=jnp.float32)    # [N, tn]
            s = s - jnp.max(s, axis=0, keepdims=True)
            p = jnp.exp(s)
            denom = jnp.sum(p, axis=0, keepdims=True)                  # [1, tn]
            # PV matmul on unnormalized p (contraction over N), normalize the
            # small [dh, tn] result instead of the [N, tn] prob matrix.
            oh = jnp.dot(vh[r0:r1, :], p,
                         preferred_element_type=jnp.float32)           # [dh, tn]
            attn_s[r0:r1, :] = oh * pl.reciprocal(denom, approx=True)

        # Fused (out_proj . to_out) projection. Dropout(0.0) is the identity.
        out = (jnp.dot(wo_ref[...], attn_s[...],
                       preferred_element_type=jnp.float32) + bo_ref[...])
        o_ref[0] = out.astype(o_ref.dtype)

    return kernel


def fold_params(params):
    """Fold MHA in_proj / out_proj / softmax scale into the neighboring linears."""
    (wq1, wq2, wk1, wk2, wv1, wv2, w_in, b_in, w_o, b_o, w_out, b_out) = params
    E = w_o.shape[0]
    dh = E // HEADS
    scale = 1.0 / (dh ** 0.5)
    H = PROJ_HIDDEN
    with jax.default_matmul_precision("highest"):
        wq_f = scale * (w_in[0:E] @ wq2)                   # [E, 40]
        bq_f = scale * b_in[0:E]                           # [E]
        wk_f = w_in[E:2 * E] @ wk2                         # [E, 40]
        wv_f = w_in[2 * E:3 * E] @ wv2                     # [E, 40]
        wo_f = w_out @ w_o                                 # [DOUT, E]
        bo_f = w_out @ b_o + b_out                         # [DOUT]
    # Stacked K/V projection: first layer [80, Dq], block-diagonal second [2E, 80].
    wkv1 = jnp.concatenate([wk1, wv1], axis=0)             # [80, Dq]
    wkv2 = jnp.zeros((2 * E, 2 * H), jnp.float32)
    wkv2 = wkv2.at[:E, :H].set(wk_f).at[E:, H:].set(wv_f)
    bkv = jnp.concatenate([b_in[E:2 * E], b_in[2 * E:3 * E]]).reshape(-1, 1)
    return (wq1, wq_f, bq_f.reshape(-1, 1), wkv1, wkv2, bkv,
            wo_f, bo_f.reshape(-1, 1))


def cross_attention(x, params, *, q_tile=None):
    """x: [B, query_dim, N] float32 (PyTorch NCW layout). Returns [B, out_dim, N]."""
    B, Dq, N = x.shape
    wq1, wq_f, bq, wkv1, wkv2, bkv, wo_f, bo = fold_params(params)
    E = wq_f.shape[0]
    DOUT = wo_f.shape[0]
    H2 = wkv1.shape[0]

    # Query-tile size: full N for small/odd N, otherwise a 128-multiple divisor.
    if q_tile is None:
        q_tile = 128 if N >= 8192 else 256
    tn = N
    if N % 128 == 0 and N > q_tile:
        for cand in range(q_tile, 0, -128):
            if N % cand == 0:
                tn = cand
                break
    num_q_tiles = N // tn

    # Explicit VMEM budget (v5e default scoped limit is only 16 MiB; v7x physical 64).
    weight_elems = (wq1.size + wq_f.size + bq.size + wkv1.size + wkv2.size
                    + bkv.size + wo_f.size + bo.size)
    est = 4 * (2 * Dq * N            # pipelined x slab
               + 2 * DOUT * tn       # pipelined output block
               + 2 * E * N + E * tn  # resident K/V + attn scratch
               + 4 * N * tn          # one head's score/prob transients (+ slack)
               + 2 * weight_elems)
    vmem_limit = int(min(max(2 * est, 16 * 1024 * 1024), 64 * 1024 * 1024))

    kernel = _make_kernel(tn, num_q_tiles, HEADS)
    out = pl.pallas_call(
        kernel,
        out_shape=jax.ShapeDtypeStruct((B, DOUT, N), jnp.float32),
        grid_spec=pltpu.PrefetchScalarGridSpec(
            num_scalar_prefetch=0,
            grid=(B, num_q_tiles),
            in_specs=[
                pl.BlockSpec((1, Dq, N), lambda b, q: (b, 0, 0)),        # x (full slab)
                pl.BlockSpec((PROJ_HIDDEN, Dq), lambda b, q: (0, 0)),    # proj_q W1
                pl.BlockSpec((E, PROJ_HIDDEN), lambda b, q: (0, 0)),     # folded Wq (+scale)
                pl.BlockSpec((E, 1), lambda b, q: (0, 0)),               # folded bq (+scale)
                pl.BlockSpec((H2, Dq), lambda b, q: (0, 0)),             # stacked K/V W1
                pl.BlockSpec((2 * E, H2), lambda b, q: (0, 0)),          # block-diag K/V W2
                pl.BlockSpec((2 * E, 1), lambda b, q: (0, 0)),           # K/V in_proj bias
                pl.BlockSpec((DOUT, E), lambda b, q: (0, 0)),            # folded out proj W
                pl.BlockSpec((DOUT, 1), lambda b, q: (0, 0)),            # folded out proj b
            ],
            out_specs=pl.BlockSpec((1, DOUT, tn), lambda b, q: (b, 0, q)),
            scratch_shapes=[
                pltpu.VMEM((E, N), jnp.float32),    # projected K (resident per batch elt)
                pltpu.VMEM((E, N), jnp.float32),    # projected V
                pltpu.VMEM((E, tn), jnp.float32),   # per-head attention output staging
            ],
        ),
        compiler_params=pltpu.CompilerParams(
            dimension_semantics=("parallel", "arbitrary"),
            vmem_limit_bytes=vmem_limit),
    )(x, wq1, wq_f, bq, wkv1, wkv2, bkv, wo_f, bo)
    return out


def init_params(key, query_dim, out_dim, heads=HEADS, dim_head=DIM_HEAD):
    """Deterministic synthetic parameters in native PyTorch shapes
    (Linear weights are [out, in], biases are [out])."""
    ks = jax.random.split(key, 12)

    def w(k, shape):
        return jax.random.normal(k, shape, jnp.float32) * 0.1

    wq1 = w(ks[0], (PROJ_HIDDEN, query_dim))
    wq2 = w(ks[1], (dim_head, PROJ_HIDDEN))
    wk1 = w(ks[2], (PROJ_HIDDEN, query_dim))
    wk2 = w(ks[3], (dim_head, PROJ_HIDDEN))
    wv1 = w(ks[4], (PROJ_HIDDEN, query_dim))
    wv2 = w(ks[5], (dim_head, PROJ_HIDDEN))
    w_in = w(ks[6], (3 * dim_head, dim_head))     # MHA in_proj_weight
    b_in = w(ks[7], (3 * dim_head,))              # MHA in_proj_bias
    w_o = w(ks[8], (dim_head, dim_head))          # MHA out_proj weight
    b_o = w(ks[9], (dim_head,))                   # MHA out_proj bias
    w_out = w(ks[10], (out_dim, dim_head))        # to_out Linear weight
    b_out = w(ks[11], (out_dim,))                 # to_out Linear bias
    return (wq1, wq2, wk1, wk2, wv1, wv2, w_in, b_in, w_o, b_o, w_out, b_out)


def cross_attention_ref(x, params, *, heads=HEADS):
    """Pure-JAX reference matching the PyTorch module (context=None path)."""
    (wq1, wq2, wk1, wk2, wv1, wv2, w_in, b_in, w_o, b_o, w_out, b_out) = params
    B, _, N = x.shape
    E = w_o.shape[0]
    dh = E // heads
    with jax.default_matmul_precision("highest"):
        xt = jnp.transpose(x, (0, 2, 1))                       # [B, N, Dq]

        def two_layer(w1, w2, t):
            return jnp.maximum(t @ w1.T, 0.0) @ w2.T

        q = two_layer(wq1, wq2, xt)                            # [B, N, E]
        k = two_layer(wk1, wk2, xt)
        v = two_layer(wv1, wv2, xt)

        qh = q @ w_in[0:E].T + b_in[0:E]
        kh = k @ w_in[E:2 * E].T + b_in[E:2 * E]
        vh = v @ w_in[2 * E:3 * E].T + b_in[2 * E:3 * E]

        def split(t):
            return t.reshape(B, N, heads, dh).transpose(0, 2, 1, 3)   # [B,H,N,dh]

        qh, kh, vh = split(qh), split(kh), split(vh)
        s = jnp.einsum('bhnd,bhmd->bhnm', qh, kh) / jnp.sqrt(jnp.float32(dh))
        p = jax.nn.softmax(s, axis=-1)
        o = jnp.einsum('bhnm,bhmd->bhnd', p, vh)
        o = o.transpose(0, 2, 1, 3).reshape(B, N, E)
        o = o @ w_o.T + b_o
        out = o @ w_out.T + b_out                              # [B, N, out_dim]
    return jnp.transpose(out, (0, 2, 1))                       # [B, out_dim, N]


if __name__ == "__main__":
    B, QUERY_DIM, N, OUT_DIM = 2, 8, 16, 32
    key = jax.random.PRNGKey(0)
    kx, kp = jax.random.split(key)
    x = jax.random.normal(kx, (B, QUERY_DIM, N), jnp.float32)   # [B, query_dim, num]
    params = init_params(kp, query_dim=QUERY_DIM, out_dim=OUT_DIM)

    out = cross_attention(x, params)
    out = jax.block_until_ready(out)

    ref = cross_attention_ref(x, params)
    assert out.shape == (B, OUT_DIM, N), out.shape
    assert jnp.allclose(out, ref, atol=5e-3, rtol=5e-3), \
        float(jnp.max(jnp.abs(out - ref)))

    print("KERNEL_OK")
</pallas_src>

<mosaic_0001>
module attributes {stable_mosaic.version = 11 : i64} {
  func.func @kernel(%arg0: i32, %arg1: i32, %arg2: memref<1x8x16xf32, #tpu.memory_space<vmem>>, %arg3: memref<40x8xf32, #tpu.memory_space<vmem>>, %arg4: memref<32x40xf32, #tpu.memory_space<vmem>>, %arg5: memref<32x1xf32, #tpu.memory_space<vmem>>, %arg6: memref<80x8xf32, #tpu.memory_space<vmem>>, %arg7: memref<64x80xf32, #tpu.memory_space<vmem>>, %arg8: memref<64x1xf32, #tpu.memory_space<vmem>>, %arg9: memref<32x32xf32, #tpu.memory_space<vmem>>, %arg10: memref<32x1xf32, #tpu.memory_space<vmem>>, %arg11: memref<1x32x16xf32, #tpu.memory_space<vmem>>, %arg12: memref<32x16xf32, #tpu.memory_space<vmem>>, %arg13: memref<32x16xf32, #tpu.memory_space<vmem>>, %arg14: memref<32x16xf32, #tpu.memory_space<vmem>>) attributes {dimension_semantics = [#tpu.dimension_semantics<parallel>, #tpu.dimension_semantics<arbitrary>], iteration_bounds = array<i64: 2, 1>, scalar_prefetch = 0 : i64, scratch_operands = 3 : i64, tpu.core_type = #tpu.core_type<tc>, window_params = [{transform_indices = @transform_0, window_bounds = array<i64: 1, 8, 16>}, {pipeline_mode = #tpu.pipeline_mode<synchronous>, transform_indices = @transform_1, window_bounds = array<i64: 40, 8>}, {pipeline_mode = #tpu.pipeline_mode<synchronous>, transform_indices = @transform_2, window_bounds = array<i64: 32, 40>}, {pipeline_mode = #tpu.pipeline_mode<synchronous>, transform_indices = @transform_3, window_bounds = array<i64: 32, 1>}, {pipeline_mode = #tpu.pipeline_mode<synchronous>, transform_indices = @transform_4, window_bounds = array<i64: 80, 8>}, {pipeline_mode = #tpu.pipeline_mode<synchronous>, transform_indices = @transform_5, window_bounds = array<i64: 64, 80>}, {pipeline_mode = #tpu.pipeline_mode<synchronous>, transform_indices = @transform_6, window_bounds = array<i64: 64, 1>}, {pipeline_mode = #tpu.pipeline_mode<synchronous>, transform_indices = @transform_7, window_bounds = array<i64: 32, 32>}, {pipeline_mode = #tpu.pipeline_mode<synchronous>, transform_indices = @transform_8, window_bounds = array<i64: 32, 1>}, {transform_indices = @transform_9, window_bounds = array<i64: 1, 32, 16>}]} {
    %c0_i32 = arith.constant 0 : i32
    %0 = arith.cmpi eq, %arg1, %c0_i32 : i32
    %1 = arith.extui %0 : i1 to i32
    %c0_i32_0 = arith.constant 0 : i32
    %2 = arith.cmpi ne, %1, %c0_i32_0 : i32
    scf.if %2 {
      %c0_46 = arith.constant 0 : index
      %c0_47 = arith.constant 0 : index
      %c0_48 = arith.constant 0 : index
      %89 = vector.load %arg2[%c0_46, %c0_47, %c0_48] : memref<1x8x16xf32, #tpu.memory_space<vmem>>, vector<1x8x16xf32>
      %90 = vector.shape_cast %89 : vector<1x8x16xf32> to vector<8x16xf32>
      %c0_49 = arith.constant 0 : index
      %c0_50 = arith.constant 0 : index
      %91 = vector.load %arg6[%c0_49, %c0_50] : memref<80x8xf32, #tpu.memory_space<vmem>>, vector<80x8xf32>
      %cst_51 = arith.constant dense<0.000000e+00> : vector<80x16xf32>
      %92 = tpu.matmul %91, %90, %cst_51 {dimension_numbers = #tpu.dot_dimension_numbers<[1], [0], [0], [1], [0, 0, 1, 1], [], []>} : vector<80x8xf32>, vector<8x16xf32>, vector<80x16xf32> -> vector<80x16xf32>
      %cst_52 = arith.constant 0.000000e+00 : f32
      %93 = vector.broadcast %cst_52 : f32 to vector<80x16xf32>
      %94 = arith.maximumf %92, %93 : vector<80x16xf32>
      %c0_53 = arith.constant 0 : index
      %c0_54 = arith.constant 0 : index
      %95 = vector.load %arg7[%c0_53, %c0_54] : memref<64x80xf32, #tpu.memory_space<vmem>>, vector<64x80xf32>
      %cst_55 = arith.constant dense<0.000000e+00> : vector<64x16xf32>
      %96 = tpu.matmul %95, %94, %cst_55 {dimension_numbers = #tpu.dot_dimension_numbers<[1], [0], [0], [1], [0, 0, 1, 1], [], []>} : vector<64x80xf32>, vector<80x16xf32>, vector<64x16xf32> -> vector<64x16xf32>
      %c0_56 = arith.constant 0 : index
      %c0_57 = arith.constant 0 : index
      %97 = vector.load %arg8[%c0_56, %c0_57] : memref<64x1xf32, #tpu.memory_space<vmem>>, vector<64x1xf32>
      %98 = vector.broadcast %97 : vector<64x1xf32> to vector<64x16xf32>
      %99 = arith.addf %96, %98 : vector<64x16xf32>
      %100 = vector.extract_strided_slice %99 {offsets = [0, 0], sizes = [32, 16], strides = [1, 1]} : vector<64x16xf32> to vector<32x16xf32>
      %c0_58 = arith.constant 0 : index
      %c0_59 = arith.constant 0 : index
      %101 = vector.load %arg12[%c0_58, %c0_59] : memref<32x16xf32, #tpu.memory_space<vmem>>, vector<32x16xf32>
      tpu.vector_store %arg12[%c0_58, %c0_59], %100 {strides = array<i32>} : memref<32x16xf32, #tpu.memory_space<vmem>>, vector<32x16xf32>,
      %102 = vector.extract_strided_slice %99 {offsets = [32, 0], sizes = [32, 16], strides = [1, 1]} : vector<64x16xf32> to vector<32x16xf32>
      %c0_60 = arith.constant 0 : index
      %c0_61 = arith.constant 0 : index
      %103 = vector.load %arg13[%c0_60, %c0_61] : memref<32x16xf32, #tpu.memory_space<vmem>>, vector<32x16xf32>
      tpu.vector_store %arg13[%c0_60, %c0_61], %102 {strides = array<i32>} : memref<32x16xf32, #tpu.memory_space<vmem>>, vector<32x16xf32>,
    } else {
    }
    %c0 = arith.constant 0 : index
    %c0_1 = arith.constant 0 : index
    %c0_2 = arith.constant 0 : index
    %3 = vector.load %arg2[%c0, %c0_1, %c0_2] : memref<1x8x16xf32, #tpu.memory_space<vmem>>, vector<1x8x16xf32>
    %4 = vector.shape_cast %3 : vector<1x8x16xf32> to vector<8x16xf32>
    %c0_3 = arith.constant 0 : index
    %c0_4 = arith.constant 0 : index
    %5 = vector.load %arg3[%c0_3, %c0_4] : memref<40x8xf32, #tpu.memory_space<vmem>>, vector<40x8xf32>
    %cst = arith.constant dense<0.000000e+00> : vector<40x16xf32>
    %6 = tpu.matmul %5, %4, %cst {dimension_numbers = #tpu.dot_dimension_numbers<[1], [0], [0], [1], [0, 0, 1, 1], [], []>} : vector<40x8xf32>, vector<8x16xf32>, vector<40x16xf32> -> vector<40x16xf32>
    %cst_5 = arith.constant 0.000000e+00 : f32
    %7 = vector.broadcast %cst_5 : f32 to vector<40x16xf32>
    %8 = arith.maximumf %6, %7 : vector<40x16xf32>
    %c0_6 = arith.constant 0 : index
    %c0_7 = arith.constant 0 : index
    %9 = vector.load %arg4[%c0_6, %c0_7] : memref<32x40xf32, #tpu.memory_space<vmem>>, vector<32x40xf32>
    %cst_8 = arith.constant dense<0.000000e+00> : vector<32x16xf32>
    %10 = tpu.matmul %9, %8, %cst_8 {dimension_numbers = #tpu.dot_dimension_numbers<[1], [0], [0], [1], [0, 0, 1, 1], [], []>} : vector<32x40xf32>, vector<40x16xf32>, vector<32x16xf32> -> vector<32x16xf32>
    %c0_9 = arith.constant 0 : index
    %c0_10 = arith.constant 0 : index
    %11 = vector.load %arg5[%c0_9, %c0_10] : memref<32x1xf32, #tpu.memory_space<vmem>>, vector<32x1xf32>
    %12 = vector.broadcast %11 : vector<32x1xf32> to vector<32x16xf32>
    %13 = arith.addf %10, %12 : vector<32x16xf32>
    %c0_11 = arith.constant 0 : index
    %c0_12 = arith.constant 0 : index
    %14 = vector.load %arg12[%c0_11, %c0_12] : memref<32x16xf32, #tpu.memory_space<vmem>>, vector<32x16xf32>
    %c0_13 = arith.constant 0 : index
    %c0_14 = arith.constant 0 : index
    %15 = vector.load %arg13[%c0_13, %c0_14] : memref<32x16xf32, #tpu.memory_space<vmem>>, vector<32x16xf32>
    %16 = vector.extract_strided_slice %14 {offsets = [0, 0], sizes = [8, 16], strides = [1, 1]} : vector<32x16xf32> to vector<8x16xf32>
    %17 = vector.extract_strided_slice %13 {offsets = [0, 0], sizes = [8, 16], strides = [1, 1]} : vector<32x16xf32> to vector<8x16xf32>
    %cst_15 = arith.constant dense<0.000000e+00> : vector<16x16xf32>
    %18 = tpu.matmul %16, %17, %cst_15 {dimension_numbers = #tpu.dot_dimension_numbers<[0], [0], [1], [1], [0, 1, 1, 1], [], []>} : vector<8x16xf32>, vector<8x16xf32>, vector<16x16xf32> -> vector<16x16xf32>
    %cst_16 = arith.constant dense<0xFF800000> : vector<16xf32>
    %19 = vector.multi_reduction <maximumf>, %18, %cst_16 [0] : vector<16x16xf32> to vector<16xf32>
    %20 = vector.shape_cast %19 : vector<16xf32> to vector<1x16xf32>
    %21 = vector.broadcast %20 : vector<1x16xf32> to vector<16x16xf32>
    %22 = arith.subf %18, %21 : vector<16x16xf32>
    %23 = math.exp %22 : vector<16x16xf32>
    %cst_17 = arith.constant dense<0.000000e+00> : vector<16xf32>
    %24 = vector.multi_reduction <add>, %23, %cst_17 [0] : vector<16x16xf32> to vector<16xf32>
    %25 = vector.shape_cast %24 : vector<16xf32> to vector<1x16xf32>
    %26 = vector.extract_strided_slice %15 {offsets = [0, 0], sizes = [8, 16], strides = [1, 1]} : vector<32x16xf32> to vector<8x16xf32>
    %cst_18 = arith.constant dense<0.000000e+00> : vector<8x16xf32>
    %27 = tpu.matmul %26, %23, %cst_18 {dimension_numbers = #tpu.dot_dimension_numbers<[1], [0], [0], [1], [0, 0, 1, 1], [], []>} : vector<8x16xf32>, vector<16x16xf32>, vector<8x16xf32> -> vector<8x16xf32>
    %28 = tpu.reciprocal %25 {approx = true} : vector<1x16xf32> -> vector<1x16xf32>
    %29 = vector.broadcast %28 : vector<1x16xf32> to vector<8x16xf32>
    %30 = arith.mulf %27, %29 : vector<8x16xf32>
    %c0_19 = arith.constant 0 : index
    %c0_20 = arith.constant 0 : index
    %31 = vector.load %arg14[%c0_19, %c0_20] : memref<32x16xf32, #tpu.memory_space<vmem>>, vector<8x16xf32>
    tpu.vector_store %arg14[%c0_19, %c0_20], %30 {strides = array<i32>} : memref<32x16xf32, #tpu.memory_space<vmem>>, vector<8x16xf32>,
    %32 = vector.extract_strided_slice %14 {offsets = [8, 0], sizes = [8, 16], strides = [1, 1]} : vector<32x16xf32> to vector<8x16xf32>
    %33 = vector.extract_strided_slice %13 {offsets = [8, 0], sizes = [8, 16], strides = [1, 1]} : vector<32x16xf32> to vector<8x16xf32>
    %cst_21 = arith.constant dense<0.000000e+00> : vector<16x16xf32>
    %34 = tpu.matmul %32, %33, %cst_21 {dimension_numbers = #tpu.dot_dimension_numbers<[0], [0], [1], [1], [0, 1, 1, 1], [], []>} : vector<8x16xf32>, vector<8x16xf32>, vector<16x16xf32> -> vector<16x16xf32>
    %cst_22 = arith.constant dense<0xFF800000> : vector<16xf32>
    %35 = vector.multi_reduction <maximumf>, %34, %cst_22 [0] : vector<16x16xf32> to vector<16xf32>
    %36 = vector.shape_cast %35 : vector<16xf32> to vector<1x16xf32>
    %37 = vector.broadcast %36 : vector<1x16xf32> to vector<16x16xf32>
    %38 = arith.subf %34, %37 : vector<16x16xf32>
    %39 = math.exp %38 : vector<16x16xf32>
    %cst_23 = arith.constant dense<0.000000e+00> : vector<16xf32>
    %40 = vector.multi_reduction <add>, %39, %cst_23 [0] : vector<16x16xf32> to vector<16xf32>
    %41 = vector.shape_cast %40 : vector<16xf32> to vector<1x16xf32>
    %42 = vector.extract_strided_slice %15 {offsets = [8, 0], sizes = [8, 16], strides = [1, 1]} : vector<32x16xf32> to vector<8x16xf32>
    %cst_24 = arith.constant dense<0.000000e+00> : vector<8x16xf32>
    %43 = tpu.matmul %42, %39, %cst_24 {dimension_numbers = #tpu.dot_dimension_numbers<[1], [0], [0], [1], [0, 0, 1, 1], [], []>} : vector<8x16xf32>, vector<16x16xf32>, vector<8x16xf32> -> vector<8x16xf32>
    %44 = tpu.reciprocal %41 {approx = true} : vector<1x16xf32> -> vector<1x16xf32>
    %45 = vector.broadcast %44 : vector<1x16xf32> to vector<8x16xf32>
    %46 = arith.mulf %43, %45 : vector<8x16xf32>
    %c8 = arith.constant 8 : index
    %c0_25 = arith.constant 0 : index
    %47 = vector.load %arg14[%c8, %c0_25] : memref<32x16xf32, #tpu.memory_space<vmem>>, vector<8x16xf32>
    tpu.vector_store %arg14[%c8, %c0_25], %46 {strides = array<i32>} : memref<32x16xf32, #tpu.memory_space<vmem>>, vector<8x16xf32>,
    %48 = vector.extract_strided_slice %14 {offsets = [16, 0], sizes = [8, 16], strides = [1, 1]} : vector<32x16xf32> to vector<8x16xf32>
    %49 = vector.extract_strided_slice %13 {offsets = [16, 0], sizes = [8, 16], strides = [1, 1]} : vector<32x16xf32> to vector<8x16xf32>
    %cst_26 = arith.constant dense<0.000000e+00> : vector<16x16xf32>
    %50 = tpu.matmul %48, %49, %cst_26 {dimension_numbers = #tpu.dot_dimension_numbers<[0], [0], [1], [1], [0, 1, 1, 1], [], []>} : vector<8x16xf32>, vector<8x16xf32>, vector<16x16xf32> -> vector<16x16xf32>
    %cst_27 = arith.constant dense<0xFF800000> : vector<16xf32>
    %51 = vector.multi_reduction <maximumf>, %50, %cst_27 [0] : vector<16x16xf32> to vector<16xf32>
    %52 = vector.shape_cast %51 : vector<16xf32> to vector<1x16xf32>
    %53 = vector.broadcast %52 : vector<1x16xf32> to vector<16x16xf32>
    %54 = arith.subf %50, %53 : vector<16x16xf32>
    %55 = math.exp %54 : vector<16x16xf32>
    %cst_28 = arith.constant dense<0.000000e+00> : vector<16xf32>
    %56 = vector.multi_reduction <add>, %55, %cst_28 [0] : vector<16x16xf32> to vector<16xf32>
    %57 = vector.shape_cast %56 : vector<16xf32> to vector<1x16xf32>
    %58 = vector.extract_strided_slice %15 {offsets = [16, 0], sizes = [8, 16], strides = [1, 1]} : vector<32x16xf32> to vector<8x16xf32>
    %cst_29 = arith.constant dense<0.000000e+00> : vector<8x16xf32>
    %59 = tpu.matmul %58, %55, %cst_29 {dimension_numbers = #tpu.dot_dimension_numbers<[1], [0], [0], [1], [0, 0, 1, 1], [], []>} : vector<8x16xf32>, vector<16x16xf32>, vector<8x16xf32> -> vector<8x16xf32>
    %60 = tpu.reciprocal %57 {approx = true} : vector<1x16xf32> -> vector<1x16xf32>
    %61 = vector.broadcast %60 : vector<1x16xf32> to vector<8x16xf32>
    %62 = arith.mulf %59, %61 : vector<8x16xf32>
    %c16 = arith.constant 16 : index
    %c0_30 = arith.constant 0 : index
    %63 = vector.load %arg14[%c16, %c0_30] : memref<32x16xf32, #tpu.memory_space<vmem>>, vector<8x16xf32>
    tpu.vector_store %arg14[%c16, %c0_30], %62 {strides = array<i32>} : memref<32x16xf32, #tpu.memory_space<vmem>>, vector<8x16xf32>,
    %64 = vector.extract_strided_slice %14 {offsets = [24, 0], sizes = [8, 16], strides = [1, 1]} : vector<32x16xf32> to vector<8x16xf32>
    %65 = vector.extract_strided_slice %13 {offsets = [24, 0], sizes = [8, 16], strides = [1, 1]} : vector<32x16xf32> to vector<8x16xf32>
    %cst_31 = arith.constant dense<0.000000e+00> : vector<16x16xf32>
    %66 = tpu.matmul %64, %65, %cst_31 {dimension_numbers = #tpu.dot_dimension_numbers<[0], [0], [1], [1], [0, 1, 1, 1], [], []>} : vector<8x16xf32>, vector<8x16xf32>, vector<16x16xf32> -> vector<16x16xf32>
    %cst_32 = arith.constant dense<0xFF800000> : vector<16xf32>
    %67 = vector.multi_reduction <maximumf>, %66, %cst_32 [0] : vector<16x16xf32> to vector<16xf32>
    %68 = vector.shape_cast %67 : vector<16xf32> to vector<1x16xf32>
    %69 = vector.broadcast %68 : vector<1x16xf32> to vector<16x16xf32>
    %70 = arith.subf %66, %69 : vector<16x16xf32>
    %71 = math.exp %70 : vector<16x16xf32>
    %cst_33 = arith.constant dense<0.000000e+00> : vector<16xf32>
    %72 = vector.multi_reduction <add>, %71, %cst_33 [0] : vector<16x16xf32> to vector<16xf32>
    %73 = vector.shape_cast %72 : vector<16xf32> to vector<1x16xf32>
    %74 = vector.extract_strided_slice %15 {offsets = [24, 0], sizes = [8, 16], strides = [1, 1]} : vector<32x16xf32> to vector<8x16xf32>
    %cst_34 = arith.constant dense<0.000000e+00> : vector<8x16xf32>
    %75 = tpu.matmul %74, %71, %cst_34 {dimension_numbers = #tpu.dot_dimension_numbers<[1], [0], [0], [1], [0, 0, 1, 1], [], []>} : vector<8x16xf32>, vector<16x16xf32>, vector<8x16xf32> -> vector<8x16xf32>
    %76 = tpu.reciprocal %73 {approx = true} : vector<1x16xf32> -> vector<1x16xf32>
    %77 = vector.broadcast %76 : vector<1x16xf32> to vector<8x16xf32>
    %78 = arith.mulf %75, %77 : vector<8x16xf32>
    %c24 = arith.constant 24 : index
    %c0_35 = arith.constant 0 : index
    %79 = vector.load %arg14[%c24, %c0_35] : memref<32x16xf32, #tpu.memory_space<vmem>>, vector<8x16xf32>
    tpu.vector_store %arg14[%c24, %c0_35], %78 {strides = array<i32>} : memref<32x16xf32, #tpu.memory_space<vmem>>, vector<8x16xf32>,
    %c0_36 = arith.constant 0 : index
    %c0_37 = arith.constant 0 : index
    %80 = vector.load %arg9[%c0_36, %c0_37] : memref<32x32xf32, #tpu.memory_space<vmem>>, vector<32x32xf32>
    %c0_38 = arith.constant 0 : index
    %c0_39 = arith.constant 0 : index
    %81 = vector.load %arg14[%c0_38, %c0_39] : memref<32x16xf32, #tpu.memory_space<vmem>>, vector<32x16xf32>
    %cst_40 = arith.constant dense<0.000000e+00> : vector<32x16xf32>
    %82 = tpu.matmul %80, %81, %cst_40 {dimension_numbers = #tpu.dot_dimension_numbers<[1], [0], [0], [1], [0, 0, 1, 1], [], []>} : vector<32x32xf32>, vector<32x16xf32>, vector<32x16xf32> -> vector<32x16xf32>
    %c0_41 = arith.constant 0 : index
    %c0_42 = arith.constant 0 : index
    %83 = vector.load %arg10[%c0_41, %c0_42] : memref<32x1xf32, #tpu.memory_space<vmem>>, vector<32x1xf32>
    %84 = vector.broadcast %83 : vector<32x1xf32> to vector<32x16xf32>
    %85 = arith.addf %82, %84 : vector<32x16xf32>
    %c0_43 = arith.constant 0 : index
    %c0_44 = arith.constant 0 : index
    %c0_45 = arith.constant 0 : index
    %86 = vector.load %arg11[%c0_43, %c0_44, %c0_45] : memref<1x32x16xf32, #tpu.memory_space<vmem>>, vector<1x32x16xf32>
    %87 = vector.shape_cast %86 : vector<1x32x16xf32> to vector<32x16xf32>
    %88 = vector.shape_cast %85 : vector<32x16xf32> to vector<1x32x16xf32>
    tpu.vector_store %arg11[%c0_43, %c0_44, %c0_45], %88 {strides = array<i32>} : memref<1x32x16xf32, #tpu.memory_space<vmem>>, vector<1x32x16xf32>,
    return
  }
  func.func @transform_0(%arg0: i32, %arg1: i32) -> (i32, i32, i32) {
    %c0_i32 = arith.constant 0 : i32
    %c0_i32_0 = arith.constant 0 : i32
    %c0_i32_1 = arith.constant 0 : i32
    return %arg0, %c0_i32, %c0_i32_0 : i32, i32, i32
  }
  func.func @transform_1(%arg0: i32, %arg1: i32) -> (i32, i32) {
    %c0_i32 = arith.constant 0 : i32
    %c0_i32_0 = arith.constant 0 : i32
    %c0_i32_1 = arith.constant 0 : i32
    return %c0_i32, %c0_i32_0 : i32, i32
  }
  func.func @transform_2(%arg0: i32, %arg1: i32) -> (i32, i32) {
    %c0_i32 = arith.constant 0 : i32
    %c0_i32_0 = arith.constant 0 : i32
    %c0_i32_1 = arith.constant 0 : i32
    return %c0_i32, %c0_i32_0 : i32, i32
  }
  func.func @transform_3(%arg0: i32, %arg1: i32) -> (i32, i32) {
    %c0_i32 = arith.constant 0 : i32
    %c0_i32_0 = arith.constant 0 : i32
    %c0_i32_1 = arith.constant 0 : i32
    return %c0_i32, %c0_i32_0 : i32, i32
  }
  func.func @transform_4(%arg0: i32, %arg1: i32) -> (i32, i32) {
    %c0_i32 = arith.constant 0 : i32
    %c0_i32_0 = arith.constant 0 : i32
    %c0_i32_1 = arith.constant 0 : i32
    return %c0_i32, %c0_i32_0 : i32, i32
  }
  func.func @transform_5(%arg0: i32, %arg1: i32) -> (i32, i32) {
    %c0_i32 = arith.constant 0 : i32
    %c0_i32_0 = arith.constant 0 : i32
    %c0_i32_1 = arith.constant 0 : i32
    return %c0_i32, %c0_i32_0 : i32, i32
  }
  func.func @transform_6(%arg0: i32, %arg1: i32) -> (i32, i32) {
    %c0_i32 = arith.constant 0 : i32
    %c0_i32_0 = arith.constant 0 : i32
    %c0_i32_1 = arith.constant 0 : i32
    return %c0_i32, %c0_i32_0 : i32, i32
  }
  func.func @transform_7(%arg0: i32, %arg1: i32) -> (i32, i32) {
    %c0_i32 = arith.constant 0 : i32
    %c0_i32_0 = arith.constant 0 : i32
    %c0_i32_1 = arith.constant 0 : i32
    return %c0_i32, %c0_i32_0 : i32, i32
  }
  func.func @transform_8(%arg0: i32, %arg1: i32) -> (i32, i32) {
    %c0_i32 = arith.constant 0 : i32
    %c0_i32_0 = arith.constant 0 : i32
    %c0_i32_1 = arith.constant 0 : i32
    return %c0_i32, %c0_i32_0 : i32, i32
  }
  func.func @transform_9(%arg0: i32, %arg1: i32) -> (i32, i32, i32) {
    %c0_i32 = arith.constant 0 : i32
    %c0_i32_0 = arith.constant 0 : i32
    return %arg0, %c0_i32, %arg1 : i32, i32, i32
  }
}

</mosaic_0001>

<llo_original>
// kernel: tpu_custom_call.1
$region0: #{tpu_custom_call.1}
  #allocation0 [shape = 'u32[]', space=smem, size = 0x4, offset = 0x4, fixed_abs, tag = 'smem constant byte address 0x4 - core index']
  #allocation1 [shape = 'u32[144,128]{1,0:T(1,128)}', space=vmem, size = 0x12000, scoped, tag = 'internal scratch']
  #allocation2 [shape = 'f32[32,16]{1,0:T(8,128)}', space=vmem, size = 0x4000, scoped, tag = 'scratch operand']
  #allocation3 [shape = 'f32[32,16]{1,0:T(8,128)}', space=vmem, size = 0x4000, scoped, tag = 'scratch operand']
  #allocation4 [shape = 'f32[32,16]{1,0:T(8,128)}', space=vmem, size = 0x4000, scoped, tag = 'scratch operand']
  %s0 = inlined_call_operand.vmem [shape: f32[2,8,16], index: 0, kind: input, shape index: {}]
  %s1 = inlined_call_operand.vmem [shape: f32[40,8], index: 1, kind: input, shape index: {}]
  %s2 = inlined_call_operand.vmem [shape: f32[32,40], index: 2, kind: input, shape index: {}]
  %s3 = inlined_call_operand.vmem [shape: f32[32,1], index: 3, kind: input, shape index: {}]
  %s4 = inlined_call_operand.vmem [shape: f32[80,8], index: 4, kind: input, shape index: {}]
  %s5 = inlined_call_operand.vmem [shape: f32[64,80], index: 5, kind: input, shape index: {}]
  %s6 = inlined_call_operand.vmem [shape: f32[64,1], index: 6, kind: input, shape index: {}]
  %s7 = inlined_call_operand.vmem [shape: f32[32,32], index: 7, kind: input, shape index: {}]
  %s8 = inlined_call_operand.vmem [shape: f32[32,1], index: 8, kind: input, shape index: {}]
  %s9 = inlined_call_operand.vmem [shape: f32[2,32,16], index: 9, kind: output, shape index: {}]
  %s10 = sld [smem:[#allocation0]]
  $region73: #{tpu_custom_call.1} parent=0
    _
  %s12 = ssub.s32 1, %s10
  %s13 = scalar_select 0, %s12, %s10
  loop: start=0, step=1, limit=4
  $region2: #{tpu_custom_call.1} parent=0 // loop_pre_header
    _
  $region3: #{tpu_custom_call.1} parent=0 // loop_header
    %s15 = sphi 0, %s19
    %p16 = scmp.ge.s32.totalorder %s15, 4
    %s22 = sphi 0, %s34
    %s23 = sphi 0, %s30
    %s24 = sphi 0, %s22
    %s25 = sphi 0, %s23
    %s26 = sphi 0, %s24
    %s27 = sphi 0, %s25
    %s37 = sphi 0, %s39
    %s40 = sphi 0, %s37
    %s41 = sphi 0, %s40
    %s57 = sphi 0, %s41
    %s61 = sphi 0, %s61
    %s63 = sphi 0, %s61
    %s64 = sphi 0, %s63
    %s78 = sphi 0, %s64
    %s82 = sphi 0, %s82
    %s84 = sphi 0, %s82
    %s85 = sphi 0, %s84
    %s99 = sphi 0, %s85
    %s103 = sphi 0, %s103
    %s105 = sphi 0, %s103
    %s106 = sphi 0, %s105
    %s120 = sphi 0, %s106
    %s124 = sphi 0, %s124
    %s126 = sphi 0, %s124
    %s127 = sphi 0, %s126
    %s141 = sphi 0, %s127
    %s145 = sphi 0, %s145
    %s147 = sphi 0, %s145
    %s148 = sphi 0, %s147
    %s162 = sphi 0, %s148
    %s166 = sphi 0, %s166
    %s168 = sphi 0, %s166
    %s169 = sphi 0, %s168
    %s183 = sphi 0, %s169
    %s187 = sphi 0, %s187
    %s189 = sphi 0, %s187
    %s190 = sphi 0, %s189
    %s204 = sphi 0, %s190
    %s208 = sphi 0, %s208
    %s210 = sphi 0, %s208
    %s211 = sphi 0, %s210
    %s225 = sphi 0, %s211
    %s233 = sphi 0, %s235
    %s236 = sphi 0, %s233
    %s237 = sphi 0, %s236
    %s253 = sphi 0, %s237
  $region4: #{tpu_custom_call.1} parent=0 // loop_header_branch
    %18 = sbr.rel (%p16) target = $region8
  $region5: #{tpu_custom_call.1} parent=0 // loop_body
    %s20 = ssub.s32 %s15, 1
    %s21 = ssub.s32 %s15, 2
    %s28 = sadd.s32 1, %s23
    %p29 = scmp.ge.s32.totalorder %s28, 1
    %s30 = scalar_select %p29, 0, %s28
    %s31 = sadd.s32 1, %s22
    %s32 = scalar_select %p29, %s31, %s22
    %p33 = scmp.ge.s32.totalorder %s32, 2
    %s34 = scalar_select %p33, 0, %s32
    %s35 = ssub.s32 %s22, %s34
    %p36 = scmp.eq.s32.totalorder %s35, 0
    %s38 = sadd.s32 %s37, 1
    %s39 = scalar_select %p36, %s37, %s38
    %p42 = pneg %p36
    %p43 = scmp.eq.s32.totalorder %s15, 1
    %p44 = por %p42, %p43
    %p45 = scmp.ne.s32.totalorder %s37, %s40
    %p46 = scmp.eq.s32.totalorder %s15, 0
    %p47 = por %p45, %p46
    %p48 = scmp.ne.s32.totalorder %s37, %s40
    %p49 = scmp.eq.s32.totalorder %s20, 1
    %p50 = por %p48, %p49
    %p51 = scmp.ne.s32.totalorder %s40, %s41
    %p52 = scmp.eq.s32.totalorder %s20, 0
    %p53 = por %p51, %p52
    %p54 = scmp.ne.s32.totalorder %s40, %s41
    %p55 = scmp.eq.s32.totalorder %s21, 1
    %p56 = por %p54, %p55
    %p58 = scmp.ne.s32.totalorder %s41, %s57
    %p59 = scmp.eq.s32.totalorder %s21, 0
    %p60 = por %p58, %p59
    %s62 = sadd.s32 %s61, 1
    %p65 = scmp.eq.s32.totalorder %s15, 1
    %p66 = scmp.ne.s32.totalorder %s61, %s63
    %p67 = scmp.eq.s32.totalorder %s15, 0
    %p68 = por %p66, %p67
    %p69 = scmp.ne.s32.totalorder %s61, %s63
    %p70 = scmp.eq.s32.totalorder %s20, 1
    %p71 = por %p69, %p70
    %p72 = scmp.ne.s32.totalorder %s63, %s64
    %p73 = scmp.eq.s32.totalorder %s20, 0
    %p74 = por %p72, %p73
    %p75 = scmp.ne.s32.totalorder %s63, %s64
    %p76 = scmp.eq.s32.totalorder %s21, 1
    %p77 = por %p75, %p76
    %p79 = scmp.ne.s32.totalorder %s64, %s78
    %p80 = scmp.eq.s32.totalorder %s21, 0
    %p81 = por %p79, %p80
    %s83 = sadd.s32 %s82, 1
    %p86 = scmp.eq.s32.totalorder %s15, 1
    %p87 = scmp.ne.s32.totalorder %s82, %s84
    %p88 = scmp.eq.s32.totalorder %s15, 0
    %p89 = por %p87, %p88
    %p90 = scmp.ne.s32.totalorder %s82, %s84
    %p91 = scmp.eq.s32.totalorder %s20, 1
    %p92 = por %p90, %p91
    %p93 = scmp.ne.s32.totalorder %s84, %s85
    %p94 = scmp.eq.s32.totalorder %s20, 0
    %p95 = por %p93, %p94
    %p96 = scmp.ne.s32.totalorder %s84, %s85
    %p97 = scmp.eq.s32.totalorder %s21, 1
    %p98 = por %p96, %p97
    %p100 = scmp.ne.s32.totalorder %s85, %s99
    %p101 = scmp.eq.s32.totalorder %s21, 0
    %p102 = por %p100, %p101
    %s104 = sadd.s32 %s103, 1
    %p107 = scmp.eq.s32.totalorder %s15, 1
    %p108 = scmp.ne.s32.totalorder %s103, %s105
    %p109 = scmp.eq.s32.totalorder %s15, 0
    %p110 = por %p108, %p109
    %p111 = scmp.ne.s32.totalorder %s103, %s105
    %p112 = scmp.eq.s32.totalorder %s20, 1
    %p113 = por %p111, %p112
    %p114 = scmp.ne.s32.totalorder %s105, %s106
    %p115 = scmp.eq.s32.totalorder %s20, 0
    %p116 = por %p114, %p115
    %p117 = scmp.ne.s32.totalorder %s105, %s106
    %p118 = scmp.eq.s32.totalorder %s21, 1
    %p119 = por %p117, %p118
    %p121 = scmp.ne.s32.totalorder %s106, %s120
    %p122 = scmp.eq.s32.totalorder %s21, 0
    %p123 = por %p121, %p122
    %s125 = sadd.s32 %s124, 1
    %p128 = scmp.eq.s32.totalorder %s15, 1
    %p129 = scmp.ne.s32.totalorder %s124, %s126
    %p130 = scmp.eq.s32.totalorder %s15, 0
    %p131 = por %p129, %p130
    %p132 = scmp.ne.s32.totalorder %s124, %s126
    %p133 = scmp.eq.s32.totalorder %s20, 1
    %p134 = por %p132, %p133
    %p135 = scmp.ne.s32.totalorder %s126, %s127
    %p136 = scmp.eq.s32.totalorder %s20, 0
    %p137 = por %p135, %p136
    %p138 = scmp.ne.s32.totalorder %s126, %s127
    %p139 = scmp.eq.s32.totalorder %s21, 1
    %p140 = por %p138, %p139
    %p142 = scmp.ne.s32.totalorder %s127, %s141
    %p143 = scmp.eq.s32.totalorder %s21, 0
    %p144 = por %p142, %p143
    %s146 = sadd.s32 %s145, 1
    %p149 = scmp.eq.s32.totalorder %s15, 1
    %p150 = scmp.ne.s32.totalorder %s145, %s147
    %p151 = scmp.eq.s32.totalorder %s15, 0
    %p152 = por %p150, %p151
    %p153 = scmp.ne.s32.totalorder %s145, %s147
    %p154 = scmp.eq.s32.totalorder %s20, 1
    %p155 = por %p153, %p154
    %p156 = scmp.ne.s32.totalorder %s147, %s148
    %p157 = scmp.eq.s32.totalorder %s20, 0
    %p158 = por %p156, %p157
    %p159 = scmp.ne.s32.totalorder %s147, %s148
    %p160 = scmp.eq.s32.totalorder %s21, 1
    %p161 = por %p159, %p160
    %p163 = scmp.ne.s32.totalorder %s148, %s162
    %p164 = scmp.eq.s32.totalorder %s21, 0
    %p165 = por %p163, %p164
    %s167 = sadd.s32 %s166, 1
    %p170 = scmp.eq.s32.totalorder %s15, 1
    %p171 = scmp.ne.s32.totalorder %s166, %s168
    %p172 = scmp.eq.s32.totalorder %s15, 0
    %p173 = por %p171, %p172
    %p174 = scmp.ne.s32.totalorder %s166, %s168
    %p175 = scmp.eq.s32.totalorder %s20, 1
    %p176 = por %p174, %p175
    %p177 = scmp.ne.s32.totalorder %s168, %s169
    %p178 = scmp.eq.s32.totalorder %s20, 0
    %p179 = por %p177, %p178
    %p180 = scmp.ne.s32.totalorder %s168, %s169
    %p181 = scmp.eq.s32.totalorder %s21, 1
    %p182 = por %p180, %p181
    %p184 = scmp.ne.s32.totalorder %s169, %s183
    %p185 = scmp.eq.s32.totalorder %s21, 0
    %p186 = por %p184, %p185
    %s188 = sadd.s32 %s187, 1
    %p191 = scmp.eq.s32.totalorder %s15, 1
    %p192 = scmp.ne.s32.totalorder %s187, %s189
    %p193 = scmp.eq.s32.totalorder %s15, 0
    %p194 = por %p192, %p193
    %p195 = scmp.ne.s32.totalorder %s187, %s189
    %p196 = scmp.eq.s32.totalorder %s20, 1
    %p197 = por %p195, %p196
    %p198 = scmp.ne.s32.totalorder %s189, %s190
    %p199 = scmp.eq.s32.totalorder %s20, 0
    %p200 = por %p198, %p199
    %p201 = scmp.ne.s32.totalorder %s189, %s190
    %p202 = scmp.eq.s32.totalorder %s21, 1
    %p203 = por %p201, %p202
    %p205 = scmp.ne.s32.totalorder %s190, %s204
    %p206 = scmp.eq.s32.totalorder %s21, 0
    %p207 = por %p205, %p206
    %s209 = sadd.s32 %s208, 1
    %p212 = scmp.eq.s32.totalorder %s15, 1
    %p213 = scmp.ne.s32.totalorder %s208, %s210
    %p214 = scmp.eq.s32.totalorder %s15, 0
    %p215 = por %p213, %p214
    %p216 = scmp.ne.s32.totalorder %s208, %s210
    %p217 = scmp.eq.s32.totalorder %s20, 1
    %p218 = por %p216, %p217
    %p219 = scmp.ne.s32.totalorder %s210, %s211
    %p220 = scmp.eq.s32.totalorder %s20, 0
    %p221 = por %p219, %p220
    %p222 = scmp.ne.s32.totalorder %s210, %s211
    %p223 = scmp.eq.s32.totalorder %s21, 1
    %p224 = por %p222, %p223
    %p226 = scmp.ne.s32.totalorder %s211, %s225
    %p227 = scmp.eq.s32.totalorder %s21, 0
    %p228 = por %p226, %p227
    %s229 = ssub.s32 %s22, %s34
    %s230 = ssub.s32 %s23, %s30
    %s231 = sor.u32 %s229, %s230
    %p232 = scmp.eq.s32.totalorder %s231, 0
    %s234 = sadd.s32 %s233, 1
    %s235 = scalar_select %p232, %s233, %s234
    %p238 = pneg %p232
    %p239 = scmp.eq.s32.totalorder %s15, 1
    %p240 = por %p238, %p239
    %p241 = scmp.ne.s32.totalorder %s233, %s236
    %p242 = scmp.eq.s32.totalorder %s15, 0
    %p243 = por %p241, %p242
    %p244 = scmp.ne.s32.totalorder %s233, %s236
    %p245 = scmp.eq.s32.totalorder %s20, 1
    %p246 = por %p244, %p245
    %p247 = scmp.ne.s32.totalorder %s236, %s237
    %p248 = scmp.eq.s32.totalorder %s20, 0
    %p249 = por %p247, %p248
    %p250 = scmp.ne.s32.totalorder %s236, %s237
    %p251 = scmp.eq.s32.totalorder %s21, 1
    %p252 = por %p250, %p251
    %p254 = scmp.ne.s32.totalorder %s237, %s253
    %p255 = scmp.eq.s32.totalorder %s21, 0
    %p256 = por %p254, %p255
    %p257 = scmp.le.s32.totalorder 1, %s15
    %p258 = scmp.lt.s32.totalorder %s15, 3
    %p259 = pnand %p257, %p258
    %p260 = pneg %p259
    // Predicated region
    $region9: #{tpu_custom_call.1} parent=5 // pred_check
      _
    $region10: #{tpu_custom_call.1} parent=5 // pred_check_branch
      %262 = sbr.rel (%p259) target = $region12
    $region11: #{tpu_custom_call.1} parent=5 // pred_region
      %s263 = ssub.s32 %s15, 1
      // Predicated region
      $region13: #{tpu_custom_call.1} parent=11 // pred_check
        %p264 = pneg %p74
      $region14: #{tpu_custom_call.1} parent=11 // pred_check_branch
        %266 = sbr.rel (%p264) target = $region16
      $region15: #{tpu_custom_call.1} parent=11 // pred_region
        _
      $region16: #{tpu_custom_call.1} parent=11 // pred_fallthru
        _
      // Predicated region
      $region17: #{tpu_custom_call.1} parent=11 // pred_check
        %p267 = pneg %p95
      $region18: #{tpu_custom_call.1} parent=11 // pred_check_branch
        %269 = sbr.rel (%p267) target = $region20
      $region19: #{tpu_custom_call.1} parent=11 // pred_region
        _
      $region20: #{tpu_custom_call.1} parent=11 // pred_fallthru
        _
      // Predicated region
      $region21: #{tpu_custom_call.1} parent=11 // pred_check
        %p270 = pneg %p116
      $region22: #{tpu_custom_call.1} parent=11 // pred_check_branch
        %272 = sbr.rel (%p270) target = $region24
      $region23: #{tpu_custom_call.1} parent=11 // pred_region
        _
      $region24: #{tpu_custom_call.1} parent=11 // pred_fallthru
        _
      // Predicated region
      $region25: #{tpu_custom_call.1} parent=11 // pred_check
        %p273 = pneg %p137
      $region26: #{tpu_custom_call.1} parent=11 // pred_check_branch
        %275 = sbr.rel (%p273) target = $region28
      $region27: #{tpu_custom_call.1} parent=11 // pred_region
        _
      $region28: #{tpu_custom_call.1} parent=11 // pred_fallthru
        _
      // Predicated region
      $region29: #{tpu_custom_call.1} parent=11 // pred_check
        %p276 = pneg %p158
      $region30: #{tpu_custom_call.1} parent=11 // pred_check_branch
        %278 = sbr.rel (%p276) target = $region32
      $region31: #{tpu_custom_call.1} parent=11 // pred_region
        _
      $region32: #{tpu_custom_call.1} parent=11 // pred_fallthru
        _
      // Predicated region
      $region33: #{tpu_custom_call.1} parent=11 // pred_check
        %p279 = pneg %p179
      $region34: #{tpu_custom_call.1} parent=11 // pred_check_branch
        %281 = sbr.rel (%p279) target = $region36
      $region35: #{tpu_custom_call.1} parent=11 // pred_region
        _
      $region36: #{tpu_custom_call.1} parent=11 // pred_fallthru
        _
      // Predicated region
      $region37: #{tpu_custom_call.1} parent=11 // pred_check
        %p282 = pneg %p200
      $region38: #{tpu_custom_call.1} parent=11 // pred_check_branch
        %284 = sbr.rel (%p282) target = $region40
      $region39: #{tpu_custom_call.1} parent=11 // pred_region
        _
      $region40: #{tpu_custom_call.1} parent=11 // pred_fallthru
        _
      // Predicated region
      $region41: #{tpu_custom_call.1} parent=11 // pred_check
        %p285 = pneg %p221
      $region42: #{tpu_custom_call.1} parent=11 // pred_check_branch
        %287 = sbr.rel (%p285) target = $region44
      $region43: #{tpu_custom_call.1} parent=11 // pred_region
        _
      $region44: #{tpu_custom_call.1} parent=11 // pred_fallthru
        _
    $region12: #{tpu_custom_call.1} parent=5 // pred_fallthru
      _
    %p288 = scmp.lt.s32.totalorder %s15, 2
    // Predicated region
    $region45: #{tpu_custom_call.1} parent=5 // pred_check
      %p289 = pneg %p288
    $region46: #{tpu_custom_call.1} parent=5 // pred_check_branch
      %291 = sbr.rel (%p289) target = $region48
    $region47: #{tpu_custom_call.1} parent=5 // pred_region
      // Predicated region
      $region49: #{tpu_custom_call.1} parent=47 // pred_check
        %p292 = pneg %p47
      $region50: #{tpu_custom_call.1} parent=47 // pred_check_branch
        %294 = sbr.rel (%p292) target = $region52
      $region51: #{tpu_custom_call.1} parent=47 // pred_region
        %p295 = scmp.lt.s32.totalorder %s22, 1
        %s296 = scalar_select %p295, %s22, 1
        %s297 = smul.addr %s296, 8
        %s298 = scalar_lea.vmem %s0, %s297
      $region52: #{tpu_custom_call.1} parent=47 // pred_fallthru
        _
    $region48: #{tpu_custom_call.1} parent=5 // pred_fallthru
      _
    %p299 = scmp.le.s32.totalorder 1, %s15
    %p300 = scmp.lt.s32.totalorder %s15, 3
    %p301 = pnand %p299, %p300
    %p302 = pneg %p301
    // Predicated region
    $region53: #{tpu_custom_call.1} parent=5 // pred_check
      _
    $region54: #{tpu_custom_call.1} parent=5 // pred_check_branch
      %304 = sbr.rel (%p301) target = $region56
    $region55: #{tpu_custom_call.1} parent=5 // pred_region
      %s305 = ssub.s32 %s15, 1
      %p306 = scmp.lt.s32.totalorder %s24, 1
      %s307 = scalar_select %p306, %s24, 1
      %s308 = smul.addr %s307, 8
      %s309 = scalar_lea.vmem %s0, %s308
      %p310 = pneg %p53
      %p311 = pneg %p50
      %p312 = pneg %p74
      %p313 = pneg %p71
      %p314 = pneg %p95
      %p315 = pneg %p92
      %p316 = pneg %p116
      %p317 = pneg %p113
      %p318 = pneg %p137
      %p319 = pneg %p134
      %p320 = pneg %p158
      %p321 = pneg %p155
      %p322 = pneg %p179
      %p323 = pneg %p176
      %p324 = pneg %p200
      %p325 = pneg %p197
      %p326 = pneg %p221
      %p327 = pneg %p218
      %p328 = pneg %p249
      %p329 = pneg %p246
      %p330 = scmp.lt.s32.totalorder %s24, 1
      %s331 = scalar_select %p330, %s24, 1
      %p332 = scmp.lt.s32.totalorder %s25, 0
      %s333 = scalar_select %p332, %s25, 0
      %s334 = smul.addr %s331, 4
      %s335 = sadd.s32 %s333, %s334
      %s336 = smul.addr %s335, 8
      %s337 = scalar_lea.vmem %s9, %s336
      %p338 = scmp.lt.s32.totalorder %s24, 1
      %s339 = scalar_select %p338, %s24, 1
      %s340 = smul.addr %s339, 8
      %s341 = scalar_lea.vmem %s0, %s340
      %p342 = scmp.lt.s32.totalorder %s24, 1
      %s343 = scalar_select %p342, %s24, 1
      %p344 = scmp.lt.s32.totalorder %s25, 0
      %s345 = scalar_select %p344, %s25, 0
      %s346 = smul.addr %s343, 4
      %s347 = sadd.s32 %s345, %s346
      %s348 = smul.addr %s347, 8
      %s349 = scalar_lea.vmem %s9, %s348
      %p350 = scmp.eq.s32.totalorder %s25, 0
      // Predicated region
      $region57: #{tpu_custom_call.1} parent=55 // pred_check
        %p351 = pneg %p350
      $region58: #{tpu_custom_call.1} parent=55 // pred_check_branch
        %353 = sbr.rel (%p351) target = $region60
      $region59: #{tpu_custom_call.1} parent=55 // pred_region
        %v354 = vld [vmem:[%s341] sm:$0xff]
        %v355 = vld [vmem:[%s4] sm:$0xff]
        %v356 = vld [vmem:[%s4 + $0x8] sm:$0xff]
        %v357 = vld [vmem:[%s4 + $0x10] sm:$0xff]
        %v358 = vld [vmem:[%s4 + $0x18] sm:$0xff]
        %v359 = vld [vmem:[%s4 + $0x20] sm:$0xff]
        %v360 = vld [vmem:[%s4 + $0x28] sm:$0xff]
        %v361 = vld [vmem:[%s4 + $0x30] sm:$0xff]
        %v362 = vld [vmem:[%s4 + $0x38] sm:$0xff]
        %v363 = vld [vmem:[%s4 + $0x40] sm:$0xff]
        %v364 = vld [vmem:[%s4 + $0x48] sm:$0xff]
        %vm365 = vcmask 64512
        %v367 = vsel %vm365, %v355, 0
        %v370 = vsel %vm365, %v356, 0
        %v373 = vsel %vm365, %v357, 0
        %v376 = vsel %vm365, %v358, 0
        %v379 = vsel %vm365, %v359, 0
        %v382 = vsel %vm365, %v360, 0
        %v385 = vsel %vm365, %v361, 0
        %v388 = vsel %vm365, %v362, 0
        %v391 = vsel %vm365, %v363, 0
        %v394 = vsel %vm365, %v364, 0
        %396 = vmatprep.subr.mxu0 0.0
        %397 = vmatpush1.msra.mxu0 %v354
        %398 = vmatprep.subr.mxu0 0.0
        %399 = vmatpush1.msra.mxu0 0.0
        %400 = vmatprep.subr.mxu0 0.0
        %401 = vmatpush1.msra.mxu0 0.0
        %402 = vmatprep.subr.mxu0 0.0
        %403 = vmatpush1.msra.mxu0 0.0
        %404 = vmatprep.subr.mxu0 0.0
        %405 = vmatpush1.msra.mxu0 0.0
        %406 = vmatprep.subr.mxu0 0.0
        %407 = vmatpush1.msra.mxu0 0.0
        %408 = vmatprep.subr.mxu0 0.0
        %409 = vmatpush1.msra.mxu0 0.0
        %410 = vmatprep.subr.mxu0 0.0
        %411 = vmatpush1.msra.mxu0 0.0
        %412 = vmatprep.subr.mxu0 0.0
        %413 = vmatpush1.msra.mxu0 0.0
        %414 = vmatprep.subr.mxu0 0.0
        %415 = vmatpush1.msra.mxu0 0.0
        %416 = vmatprep.subr.mxu0 0.0
        %417 = vmatpush1.msra.mxu0 0.0
        %418 = vmatprep.subr.mxu0 0.0
        %419 = vmatpush1.msra.mxu0 0.0
        %420 = vmatprep.subr.mxu0 0.0
        %421 = vmatpush1.msra.mxu0 0.0
        %422 = vmatprep.subr.mxu0 0.0
        %423 = vmatpush1.msra.mxu0 0.0
        %424 = vmatprep.subr.mxu0 0.0
        %425 = vmatpush1.msra.mxu0 0.0
        %426 = vmatprep.subr.mxu0 0.0
        %427 = vmatpush1.msra.mxu0 0.0
        %428 = vmatprep.subr.mxu0 0.0
        %429 = vmatpush1.msra.mxu0 0.0
        %430 = vmatprep.subr.mxu0 0.0
        %431 = vmatpush1.msra.mxu0 0.0
        %432 = vmatprep.subr.mxu0 0.0
        %433 = vmatpush1.msra.mxu0 0.0
        %434 = vmatprep.subr.mxu0 0.0
        %435 = vmatpush1.msra.mxu0 0.0
        %436 = vmatprep.subr.mxu0 0.0
        %437 = vmatpush1.msra.mxu0 0.0
        %438 = vmatprep.subr.mxu0 0.0
        %439 = vmatpush1.msra.mxu0 0.0
        %440 = vmatprep.subr.mxu0 0.0
        %441 = vmatpush1.msra.mxu0 0.0
        %442 = vmatprep.subr.mxu0 0.0
        %443 = vmatpush1.msra.mxu0 0.0
        %444 = vmatprep.subr.mxu0 0.0
        %445 = vmatpush1.msra.mxu0 0.0
        %446 = vmatprep.subr.mxu0 0.0
        %447 = vmatpush1.msra.mxu0 0.0
        %448 = vmatprep.subr.mxu0 0.0
        %449 = vmatpush1.msra.mxu0 0.0
        %450 = vmatprep.subr.mxu0 0.0
        %451 = vmatpush1.msra.mxu0 0.0
        %452 = vmatprep.subr.mxu0 0.0
        %453 = vmatpush1.msra.mxu0 0.0
        %454 = vmatprep.subr.mxu0 0.0
        %455 = vmatpush1.msra.mxu0 0.0
        %456 = vmatprep.subr.mxu0 0.0
        %457 = vmatpush1.msra.mxu0 0.0
        %458 = vmatprep.subr.mxu0 0.0
        %459 = vmatpush1.msra.mxu0 0.0
        %460 = vmatprep.mubr.f32.mxu0 0.0
        %461 = vmatmul.mubr.f32.gmra.mrb[0].mxu0 %v367
        %v462 = vpop.f32.mrb[0].mxu0
        %v463 = vadd.f32 0.0, %v462
        %v464 = vpop.f32.mrb[0].mxu0
        %465 = vmatprep.mubr.f32.mxu0 0.0
        %466 = vmatmul.mubr.f32.gmra.mrb[0].mxu0 %v370
        %v467 = vpop.f32.mrb[0].mxu0
        %v468 = vadd.f32 0.0, %v467
        %v469 = vpop.f32.mrb[0].mxu0
        %470 = vmatprep.mubr.f32.mxu0 0.0
        %471 = vmatmul.mubr.f32.gmra.mrb[0].mxu0 %v373
        %v472 = vpop.f32.mrb[0].mxu0
        %v473 = vadd.f32 0.0, %v472
        %v474 = vpop.f32.mrb[0].mxu0
        %475 = vmatprep.mubr.f32.mxu0 0.0
        %476 = vmatmul.mubr.f32.gmra.mrb[0].mxu0 %v376
        %v477 = vpop.f32.mrb[0].mxu0
        %v478 = vadd.f32 0.0, %v477
        %v479 = vpop.f32.mrb[0].mxu0
        %480 = vmatprep.mubr.f32.mxu0 0.0
        %481 = vmatmul.mubr.f32.gmra.mrb[0].mxu0 %v379
        %v482 = vpop.f32.mrb[0].mxu0
        %v483 = vadd.f32 0.0, %v482
        %v484 = vpop.f32.mrb[0].mxu0
        %485 = vmatprep.mubr.f32.mxu0 0.0
        %486 = vmatmul.mubr.f32.gmra.mrb[0].mxu0 %v382
        %v487 = vpop.f32.mrb[0].mxu0
        %v488 = vadd.f32 0.0, %v487
        %v489 = vpop.f32.mrb[0].mxu0
        %490 = vmatprep.mubr.f32.mxu0 0.0
        %491 = vmatmul.mubr.f32.gmra.mrb[0].mxu0 %v385
        %v492 = vpop.f32.mrb[0].mxu0
        %v493 = vadd.f32 0.0, %v492
        %v494 = vpop.f32.mrb[0].mxu0
        %495 = vmatprep.mubr.f32.mxu0 0.0
        %496 = vmatmul.mubr.f32.gmra.mrb[0].mxu0 %v388
        %v497 = vpop.f32.mrb[0].mxu0
        %v498 = vadd.f32 0.0, %v497
        %v499 = vpop.f32.mrb[0].mxu0
        %500 = vmatprep.mubr.f32.mxu0 0.0
        %501 = vmatmul.mubr.f32.gmra.mrb[0].mxu0 %v391
        %v502 = vpop.f32.mrb[0].mxu0
        %v503 = vadd.f32 0.0, %v502
        %v504 = vpop.f32.mrb[0].mxu0
        %505 = vmatprep.mubr.f32.mxu0 0.0
        %506 = vmatmul.mubr.f32.gmra.mrb[0].mxu0 %v394
        %v507 = vpop.f32.mrb[0].mxu0
        %v508 = vadd.f32 0.0, %v507
        %v509 = vpop.f32.mrb[0].mxu0
        %510 = vdwg.mxu0
        %v511 = vmax.f32 %v463, 0.0
        %v512 = vmax.f32 %v468, 0.0
        %v513 = vmax.f32 %v473, 0.0
        %v514 = vmax.f32 %v478, 0.0
        %v515 = vmax.f32 %v483, 0.0
        %v516 = vmax.f32 %v488, 0.0
        %v517 = vmax.f32 %v493, 0.0
        %v518 = vmax.f32 %v498, 0.0
        %v519 = vmax.f32 %v503, 0.0
        %v520 = vmax.f32 %v508, 0.0
        %v521 = vld [vmem:[%s5] sm:$0xff]
        %v522 = vld [vmem:[%s5 + $0x8] sm:$0xff]
        %v523 = vld [vmem:[%s5 + $0x10] sm:$0xff]
        %v524 = vld [vmem:[%s5 + $0x18] sm:$0xff]
        %v525 = vld [vmem:[%s5 + $0x20] sm:$0xff]
        %v526 = vld [vmem:[%s5 + $0x28] sm:$0xff]
        %v527 = vld [vmem:[%s5 + $0x30] sm:$0xff]
        %v528 = vld [vmem:[%s5 + $0x38] sm:$0xff]
        %v529 = vld [vmem:[%s6] sm:$0xff]
        %v530 = vld [vmem:[%s6 + $0x8] sm:$0xff]
        %v531 = vld [vmem:[%s6 + $0x10] sm:$0xff]
        %v532 = vld [vmem:[%s6 + $0x18] sm:$0xff]
        %v533 = vld [vmem:[%s6 + $0x20] sm:$0xff]
        %v534 = vld [vmem:[%s6 + $0x28] sm:$0xff]
        %v535 = vld [vmem:[%s6 + $0x30] sm:$0xff]
        %v536 = vld [vmem:[%s6 + $0x38] sm:$0xff]
        %538 = vset.pattern.permute.xlu0 0
        %539 = vperm.xlu0 %538, %v529
        %v540 = vpop.permute.xlu0 %539
        %543 = vset.pattern.permute.xlu0 0
        %544 = vperm.xlu0 %543, %v530
        %v545 = vpop.permute.xlu0 %544
        %548 = vset.pattern.permute.xlu0 0
        %549 = vperm.xlu0 %548, %v531
        %v550 = vpop.permute.xlu0 %549
        %553 = vset.pattern.permute.xlu0 0
        %554 = vperm.xlu0 %553, %v532
        %v555 = vpop.permute.xlu0 %554
        %558 = vset.pattern.permute.xlu0 0
        %559 = vperm.xlu0 %558, %v533
        %v560 = vpop.permute.xlu0 %559
        %563 = vset.pattern.permute.xlu0 0
        %564 = vperm.xlu0 %563, %v534
        %v565 = vpop.permute.xlu0 %564
        %568 = vset.pattern.permute.xlu0 0
        %569 = vperm.xlu0 %568, %v535
        %v570 = vpop.permute.xlu0 %569
        %573 = vset.pattern.permute.xlu0 0
        %574 = vperm.xlu0 %573, %v536
        %v575 = vpop.permute.xlu0 %574
        %vm577 = vcmask 654336
        %v579 = vsel %vm577, %v521, 0
        %v582 = vsel %vm577, %v522, 0
        %v585 = vsel %vm577, %v523, 0
        %v588 = vsel %vm577, %v524, 0
        %v591 = vsel %vm577, %v525, 0
        %v594 = vsel %vm577, %v526, 0
        %v597 = vsel %vm577, %v527, 0
        %v600 = vsel %vm577, %v528, 0
        %602 = vmatprep.subr.mxu0 0.0
        %603 = vmatpush1.msra.mxu0 %v511
        %604 = vmatprep.subr.mxu0 0.0
        %605 = vmatpush1.msra.mxu0 %v512
        %606 = vmatprep.subr.mxu0 0.0
        %607 = vmatpush1.msra.mxu0 %v513
        %608 = vmatprep.subr.mxu0 0.0
        %609 = vmatpush1.msra.mxu0 %v514
        %610 = vmatprep.subr.mxu0 0.0
        %611 = vmatpush1.msra.mxu0 %v515
        %612 = vmatprep.subr.mxu0 0.0
        %613 = vmatpush1.msra.mxu0 %v516
        %614 = vmatprep.subr.mxu0 0.0
        %615 = vmatpush1.msra.mxu0 %v517
        %616 = vmatprep.subr.mxu0 0.0
        %617 = vmatpush1.msra.mxu0 %v518
        %618 = vmatprep.subr.mxu0 0.0
        %619 = vmatpush1.msra.mxu0 %v519
        %620 = vmatprep.subr.mxu0 0.0
        %621 = vmatpush1.msra.mxu0 %v520
        %622 = vmatprep.subr.mxu0 0.0
        %623 = vmatpush1.msra.mxu0 0.0
        %624 = vmatprep.subr.mxu0 0.0
        %625 = vmatpush1.msra.mxu0 0.0
        %626 = vmatprep.subr.mxu0 0.0
        %627 = vmatpush1.msra.mxu0 0.0
        %628 = vmatprep.subr.mxu0 0.0
        %629 = vmatpush1.msra.mxu0 0.0
        %630 = vmatprep.subr.mxu0 0.0
        %631 = vmatpush1.msra.mxu0 0.0
        %632 = vmatprep.subr.mxu0 0.0
        %633 = vmatpush1.msra.mxu0 0.0
        %634 = vmatprep.subr.mxu0 0.0
        %635 = vmatpush1.msra.mxu0 0.0
        %636 = vmatprep.subr.mxu0 0.0
        %637 = vmatpush1.msra.mxu0 0.0
        %638 = vmatprep.subr.mxu0 0.0
        %639 = vmatpush1.msra.mxu0 0.0
        %640 = vmatprep.subr.mxu0 0.0
        %641 = vmatpush1.msra.mxu0 0.0
        %642 = vmatprep.subr.mxu0 0.0
        %643 = vmatpush1.msra.mxu0 0.0
        %644 = vmatprep.subr.mxu0 0.0
        %645 = vmatpush1.msra.mxu0 0.0
        %646 = vmatprep.subr.mxu0 0.0
        %647 = vmatpush1.msra.mxu0 0.0
        %648 = vmatprep.subr.mxu0 0.0
        %649 = vmatpush1.msra.mxu0 0.0
        %650 = vmatprep.subr.mxu0 0.0
        %651 = vmatpush1.msra.mxu0 0.0
        %652 = vmatprep.subr.mxu0 0.0
        %653 = vmatpush1.msra.mxu0 0.0
        %654 = vmatprep.subr.mxu0 0.0
        %655 = vmatpush1.msra.mxu0 0.0
        %656 = vmatprep.subr.mxu0 0.0
        %657 = vmatpush1.msra.mxu0 0.0
        %658 = vmatprep.subr.mxu0 0.0
        %659 = vmatpush1.msra.mxu0 0.0
        %660 = vmatprep.subr.mxu0 0.0
        %661 = vmatpush1.msra.mxu0 0.0
        %662 = vmatprep.subr.mxu0 0.0
        %663 = vmatpush1.msra.mxu0 0.0
        %664 = vmatprep.subr.mxu0 0.0
        %665 = vmatpush1.msra.mxu0 0.0
        %666 = vmatprep.mubr.f32.mxu0 0.0
        %667 = vmatmul.mubr.f32.gmra.mrb[0].mxu0 %v579
        %v668 = vpop.f32.mrb[0].mxu0
        %v669 = vadd.f32 %v540, %v668
        %v670 = vpop.f32.mrb[0].mxu0
        %671 = vmatprep.mubr.f32.mxu0 0.0
        %672 = vmatmul.mubr.f32.gmra.mrb[0].mxu0 %v582
        %v673 = vpop.f32.mrb[0].mxu0
        %v674 = vadd.f32 %v545, %v673
        %v675 = vpop.f32.mrb[0].mxu0
        %676 = vmatprep.mubr.f32.mxu0 0.0
        %677 = vmatmul.mubr.f32.gmra.mrb[0].mxu0 %v585
        %v678 = vpop.f32.mrb[0].mxu0
        %v679 = vadd.f32 %v550, %v678
        %v680 = vpop.f32.mrb[0].mxu0
        %681 = vmatprep.mubr.f32.mxu0 0.0
        %682 = vmatmul.mubr.f32.gmra.mrb[0].mxu0 %v588
        %v683 = vpop.f32.mrb[0].mxu0
        %v684 = vadd.f32 %v555, %v683
        %v685 = vpop.f32.mrb[0].mxu0
        %686 = vmatprep.mubr.f32.mxu0 0.0
        %687 = vmatmul.mubr.f32.gmra.mrb[0].mxu0 %v591
        %v688 = vpop.f32.mrb[0].mxu0
        %v689 = vadd.f32 %v560, %v688
        %v690 = vpop.f32.mrb[0].mxu0
        %691 = vmatprep.mubr.f32.mxu0 0.0
        %692 = vmatmul.mubr.f32.gmra.mrb[0].mxu0 %v594
        %v693 = vpop.f32.mrb[0].mxu0
        %v694 = vadd.f32 %v565, %v693
        %v695 = vpop.f32.mrb[0].mxu0
        %696 = vmatprep.mubr.f32.mxu0 0.0
        %697 = vmatmul.mubr.f32.gmra.mrb[0].mxu0 %v597
        %v698 = vpop.f32.mrb[0].mxu0
        %v699 = vadd.f32 %v570, %v698
        %v700 = vpop.f32.mrb[0].mxu0
        %701 = vmatprep.mubr.f32.mxu0 0.0
        %702 = vmatmul.mubr.f32.gmra.mrb[0].mxu0 %v600
        %v703 = vpop.f32.mrb[0].mxu0
        %v704 = vadd.f32 %v575, %v703
        %v705 = vpop.f32.mrb[0].mxu0
        %706 = vdwg.mxu0
        %vm707 = vcmask 130048
        %708 = vst.msk [vmem:[#allocation2] sm:$0xff] %vm707, %v669
        %709 = vst.msk [vmem:[#allocation2 + $0x8] sm:$0xff] %vm707, %v674
        %710 = vst.msk [vmem:[#allocation2 + $0x10] sm:$0xff] %vm707, %v679
        %711 = vst.msk [vmem:[#allocation2 + $0x18] sm:$0xff] %vm707, %v684
        %712 = vst.msk [vmem:[#allocation3] sm:$0xff] %vm707, %v689
        %713 = vst.msk [vmem:[#allocation3 + $0x8] sm:$0xff] %vm707, %v694
        %714 = vst.msk [vmem:[#allocation3 + $0x10] sm:$0xff] %vm707, %v699
        %715 = vst.msk [vmem:[#allocation3 + $0x18] sm:$0xff] %vm707, %v704
      $region60: #{tpu_custom_call.1} parent=55 // pred_fallthru
        _
      %v716 = vld [vmem:[%s341] sm:$0xff]
      %v717 = vld [vmem:[%s1] sm:$0xff]
      %v718 = vld [vmem:[%s1 + $0x8] sm:$0xff]
      %v719 = vld [vmem:[%s1 + $0x10] sm:$0xff]
      %v720 = vld [vmem:[%s1 + $0x18] sm:$0xff]
      %v721 = vld [vmem:[%s1 + $0x20] sm:$0xff]
      %vm722 = vcmask 64512
      %v724 = vsel %vm722, %v717, 0
      %v727 = vsel %vm722, %v718, 0
      %v730 = vsel %vm722, %v719, 0
      %v733 = vsel %vm722, %v720, 0
      %v736 = vsel %vm722, %v721, 0
      %738 = vmatprep.subr.mxu0 0.0
      %739 = vmatpush1.msra.mxu0 %v716
      %740 = vmatprep.subr.mxu0 0.0
      %741 = vmatpush1.msra.mxu0 0.0
      %742 = vmatprep.subr.mxu0 0.0
      %743 = vmatpush1.msra.mxu0 0.0
      %744 = vmatprep.subr.mxu0 0.0
      %745 = vmatpush1.msra.mxu0 0.0
      %746 = vmatprep.subr.mxu0 0.0
      %747 = vmatpush1.msra.mxu0 0.0
      %748 = vmatprep.subr.mxu0 0.0
      %749 = vmatpush1.msra.mxu0 0.0
      %750 = vmatprep.subr.mxu0 0.0
      %751 = vmatpush1.msra.mxu0 0.0
      %752 = vmatprep.subr.mxu0 0.0
      %753 = vmatpush1.msra.mxu0 0.0
      %754 = vmatprep.subr.mxu0 0.0
      %755 = vmatpush1.msra.mxu0 0.0
      %756 = vmatprep.subr.mxu0 0.0
      %757 = vmatpush1.msra.mxu0 0.0
      %758 = vmatprep.subr.mxu0 0.0
      %759 = vmatpush1.msra.mxu0 0.0
      %760 = vmatprep.subr.mxu0 0.0
      %761 = vmatpush1.msra.mxu0 0.0
      %762 = vmatprep.subr.mxu0 0.0
      %763 = vmatpush1.msra.mxu0 0.0
      %764 = vmatprep.subr.mxu0 0.0
      %765 = vmatpush1.msra.mxu0 0.0
      %766 = vmatprep.subr.mxu0 0.0
      %767 = vmatpush1.msra.mxu0 0.0
      %768 = vmatprep.subr.mxu0 0.0
      %769 = vmatpush1.msra.mxu0 0.0
      %770 = vmatprep.subr.mxu0 0.0
      %771 = vmatpush1.msra.mxu0 0.0
      %772 = vmatprep.subr.mxu0 0.0
      %773 = vmatpush1.msra.mxu0 0.0
      %774 = vmatprep.subr.mxu0 0.0
      %775 = vmatpush1.msra.mxu0 0.0
      %776 = vmatprep.subr.mxu0 0.0
      %777 = vmatpush1.msra.mxu0 0.0
      %778 = vmatprep.subr.mxu0 0.0
      %779 = vmatpush1.msra.mxu0 0.0
      %780 = vmatprep.subr.mxu0 0.0
      %781 = vmatpush1.msra.mxu0 0.0
      %782 = vmatprep.subr.mxu0 0.0
      %783 = vmatpush1.msra.mxu0 0.0
      %784 = vmatprep.subr.mxu0 0.0
      %785 = vmatpush1.msra.mxu0 0.0
      %786 = vmatprep.subr.mxu0 0.0
      %787 = vmatpush1.msra.mxu0 0.0
      %788 = vmatprep.subr.mxu0 0.0
      %789 = vmatpush1.msra.mxu0 0.0
      %790 = vmatprep.subr.mxu0 0.0
      %791 = vmatpush1.msra.mxu0 0.0
      %792 = vmatprep.subr.mxu0 0.0
      %793 = vmatpush1.msra.mxu0 0.0
      %794 = vmatprep.subr.mxu0 0.0
      %795 = vmatpush1.msra.mxu0 0.0
      %796 = vmatprep.subr.mxu0 0.0
      %797 = vmatpush1.msra.mxu0 0.0
      %798 = vmatprep.subr.mxu0 0.0
      %799 = vmatpush1.msra.mxu0 0.0
      %800 = vmatprep.subr.mxu0 0.0
      %801 = vmatpush1.msra.mxu0 0.0
      %802 = vmatprep.mubr.f32.mxu0 0.0
      %803 = vmatmul.mubr.f32.gmra.mrb[0].mxu0 %v724
      %v804 = vpop.f32.mrb[0].mxu0
      %v805 = vadd.f32 0.0, %v804
      %v806 = vpop.f32.mrb[0].mxu0
      %807 = vmatprep.mubr.f32.mxu0 0.0
      %808 = vmatmul.mubr.f32.gmra.mrb[0].mxu0 %v727
      %v809 = vpop.f32.mrb[0].mxu0
      %v810 = vadd.f32 0.0, %v809
      %v811 = vpop.f32.mrb[0].mxu0
      %812 = vmatprep.mubr.f32.mxu0 0.0
      %813 = vmatmul.mubr.f32.gmra.mrb[0].mxu0 %v730
      %v814 = vpop.f32.mrb[0].mxu0
      %v815 = vadd.f32 0.0, %v814
      %v816 = vpop.f32.mrb[0].mxu0
      %817 = vmatprep.mubr.f32.mxu0 0.0
      %818 = vmatmul.mubr.f32.gmra.mrb[0].mxu0 %v733
      %v819 = vpop.f32.mrb[0].mxu0
      %v820 = vadd.f32 0.0, %v819
      %v821 = vpop.f32.mrb[0].mxu0
      %822 = vmatprep.mubr.f32.mxu0 0.0
      %823 = vmatmul.mubr.f32.gmra.mrb[0].mxu0 %v736
      %v824 = vpop.f32.mrb[0].mxu0
      %v825 = vadd.f32 0.0, %v824
      %v826 = vpop.f32.mrb[0].mxu0
      %827 = vdwg.mxu0
      %v828 = vmax.f32 %v805, 0.0
      %v829 = vmax.f32 %v810, 0.0
      %v830 = vmax.f32 %v815, 0.0
      %v831 = vmax.f32 %v820, 0.0
      %v832 = vmax.f32 %v825, 0.0
      %v833 = vld [vmem:[%s2] sm:$0xff]
      %v834 = vld [vmem:[%s2 + $0x8] sm:$0xff]
      %v835 = vld [vmem:[%s2 + $0x10] sm:$0xff]
      %v836 = vld [vmem:[%s2 + $0x18] sm:$0xff]
      %v837 = vld [vmem:[%s3] sm:$0xff]
      %v838 = vld [vmem:[%s3 + $0x8] sm:$0xff]
      %v839 = vld [vmem:[%s3 + $0x10] sm:$0xff]
      %v840 = vld [vmem:[%s3 + $0x18] sm:$0xff]
      %842 = vset.pattern.permute.xlu0 0
      %843 = vperm.xlu0 %842, %v837
      %v844 = vpop.permute.xlu0 %843
      %847 = vset.pattern.permute.xlu0 0
      %848 = vperm.xlu0 %847, %v838
      %v849 = vpop.permute.xlu0 %848
      %852 = vset.pattern.permute.xlu0 0
      %853 = vperm.xlu0 %852, %v839
      %v854 = vpop.permute.xlu0 %853
      %857 = vset.pattern.permute.xlu0 0
      %858 = vperm.xlu0 %857, %v840
      %v859 = vpop.permute.xlu0 %858
      %vm861 = vcmask 326656
      %v863 = vsel %vm861, %v833, 0
      %v866 = vsel %vm861, %v834, 0
      %v869 = vsel %vm861, %v835, 0
      %v872 = vsel %vm861, %v836, 0
      %874 = vmatprep.subr.mxu0 0.0
      %875 = vmatpush1.msra.mxu0 %v828
      %876 = vmatprep.subr.mxu0 0.0
      %877 = vmatpush1.msra.mxu0 %v829
      %878 = vmatprep.subr.mxu0 0.0
      %879 = vmatpush1.msra.mxu0 %v830
      %880 = vmatprep.subr.mxu0 0.0
      %881 = vmatpush1.msra.mxu0 %v831
      %882 = vmatprep.subr.mxu0 0.0
      %883 = vmatpush1.msra.mxu0 %v832
      %884 = vmatprep.subr.mxu0 0.0
      %885 = vmatpush1.msra.mxu0 0.0
      %886 = vmatprep.subr.mxu0 0.0
      %887 = vmatpush1.msra.mxu0 0.0
      %888 = vmatprep.subr.mxu0 0.0
      %889 = vmatpush1.msra.mxu0 0.0
      %890 = vmatprep.subr.mxu0 0.0
      %891 = vmatpush1.msra.mxu0 0.0
      %892 = vmatprep.subr.mxu0 0.0
      %893 = vmatpush1.msra.mxu0 0.0
      %894 = vmatprep.subr.mxu0 0.0
      %895 = vmatpush1.msra.mxu0 0.0
      %896 = vmatprep.subr.mxu0 0.0
      %897 = vmatpush1.msra.mxu0 0.0
      %898 = vmatprep.subr.mxu0 0.0
      %899 = vmatpush1.msra.mxu0 0.0
      %900 = vmatprep.subr.mxu0 0.0
      %901 = vmatpush1.msra.mxu0 0.0
      %902 = vmatprep.subr.mxu0 0.0
      %903 = vmatpush1.msra.mxu0 0.0
      %904 = vmatprep.subr.mxu0 0.0
      %905 = vmatpush1.msra.mxu0 0.0
      %906 = vmatprep.subr.mxu0 0.0
      %907 = vmatpush1.msra.mxu0 0.0
      %908 = vmatprep.subr.mxu0 0.0
      %909 = vmatpush1.msra.mxu0 0.0
      %910 = vmatprep.subr.mxu0 0.0
      %911 = vmatpush1.msra.mxu0 0.0
      %912 = vmatprep.subr.mxu0 0.0
      %913 = vmatpush1.msra.mxu0 0.0
      %914 = vmatprep.subr.mxu0 0.0
      %915 = vmatpush1.msra.mxu0 0.0
      %916 = vmatprep.subr.mxu0 0.0
      %917 = vmatpush1.msra.mxu0 0.0
      %918 = vmatprep.subr.mxu0 0.0
      %919 = vmatpush1.msra.mxu0 0.0
      %920 = vmatprep.subr.mxu0 0.0
      %921 = vmatpush1.msra.mxu0 0.0
      %922 = vmatprep.subr.mxu0 0.0
      %923 = vmatpush1.msra.mxu0 0.0
      %924 = vmatprep.subr.mxu0 0.0
      %925 = vmatpush1.msra.mxu0 0.0
      %926 = vmatprep.subr.mxu0 0.0
      %927 = vmatpush1.msra.mxu0 0.0
      %928 = vmatprep.subr.mxu0 0.0
      %929 = vmatpush1.msra.mxu0 0.0
      %930 = vmatprep.subr.mxu0 0.0
      %931 = vmatpush1.msra.mxu0 0.0
      %932 = vmatprep.subr.mxu0 0.0
      %933 = vmatpush1.msra.mxu0 0.0
      %934 = vmatprep.subr.mxu0 0.0
      %935 = vmatpush1.msra.mxu0 0.0
      %936 = vmatprep.subr.mxu0 0.0
      %937 = vmatpush1.msra.mxu0 0.0
      %938 = vmatprep.mubr.f32.mxu0 0.0
      %939 = vmatmul.mubr.f32.gmra.mrb[0].mxu0 %v863
      %v940 = vpop.f32.mrb[0].mxu0
      %v941 = vadd.f32 %v844, %v940
      %v942 = vpop.f32.mrb[0].mxu0
      %943 = vmatprep.mubr.f32.mxu0 0.0
      %944 = vmatmul.mubr.f32.gmra.mrb[0].mxu0 %v866
      %v945 = vpop.f32.mrb[0].mxu0
      %v946 = vadd.f32 %v849, %v945
      %v947 = vpop.f32.mrb[0].mxu0
      %948 = vmatprep.mubr.f32.mxu0 0.0
      %949 = vmatmul.mubr.f32.gmra.mrb[0].mxu0 %v869
      %v950 = vpop.f32.mrb[0].mxu0
      %v951 = vadd.f32 %v854, %v950
      %v952 = vpop.f32.mrb[0].mxu0
      %953 = vmatprep.mubr.f32.mxu0 0.0
      %954 = vmatmul.mubr.f32.gmra.mrb[0].mxu0 %v872
      %v955 = vpop.f32.mrb[0].mxu0
      %v956 = vadd.f32 %v859, %v955
      %v957 = vpop.f32.mrb[0].mxu0
      %958 = vdwg.mxu0
      %v959 = vld [vmem:[#allocation2] sm:$0xff]
      %v960 = vld [vmem:[#allocation2 + $0x8] sm:$0xff]
      %v961 = vld [vmem:[#allocation2 + $0x10] sm:$0xff]
      %v962 = vld [vmem:[#allocation2 + $0x18] sm:$0xff]
      %v963 = vld [vmem:[#allocation3] sm:$0xff]
      %v964 = vld [vmem:[#allocation3 + $0x8] sm:$0xff]
      %v965 = vld [vmem:[#allocation3 + $0x10] sm:$0xff]
      %v966 = vld [vmem:[#allocation3 + $0x18] sm:$0xff]
      %967 = vxpose.xlu0.b32.start [1/16] %v959, 128
      %968 = vxpose.xlu0.b32.cont [2/16] 0.0, 128
      %969 = vxpose.xlu0.b32.cont [3/16] 0.0, 128
      %970 = vxpose.xlu0.b32.cont [4/16] 0.0, 128
      %971 = vxpose.xlu0.b32.cont [5/16] 0.0, 128
      %972 = vxpose.xlu0.b32.cont [6/16] 0.0, 128
      %973 = vxpose.xlu0.b32.cont [7/16] 0.0, 128
      %974 = vxpose.xlu0.b32.cont [8/16] 0.0, 128
      %975 = vxpose.xlu0.b32.cont [9/16] 0.0, 128
      %976 = vxpose.xlu0.b32.cont [10/16] 0.0, 128
      %977 = vxpose.xlu0.b32.cont [11/16] 0.0, 128
      %978 = vxpose.xlu0.b32.cont [12/16] 0.0, 128
      %979 = vxpose.xlu0.b32.cont [13/16] 0.0, 128
      %980 = vxpose.xlu0.b32.cont [14/16] 0.0, 128
      %981 = vxpose.xlu0.b32.cont [15/16] 0.0, 128
      %982 = vxpose.xlu0.b32.end [16/16] 0.0, 128
      %v983 = vpop.trf.xlu0
      %v984 = vpop.trf.xlu0
      %v985 = vpop.trf.xlu0
      %v986 = vpop.trf.xlu0
      %v987 = vpop.trf.xlu0
      %v988 = vpop.trf.xlu0
      %v989 = vpop.trf.xlu0
      %v990 = vpop.trf.xlu0
      %v991 = vpop.trf.xlu0
      %v992 = vpop.trf.xlu0
      %v993 = vpop.trf.xlu0
      %v994 = vpop.trf.xlu0
      %v995 = vpop.trf.xlu0
      %v996 = vpop.trf.xlu0
      %v997 = vpop.trf.xlu0
      %v998 = vpop.trf.xlu0
      %v1000 = vsel %vm722, %v983, 0
      %v1003 = vsel %vm722, %v984, 0
      %1005 = vmatprep.subr.mxu0 0.0
      %1006 = vmatpush1.msra.mxu0 %v941
      %1007 = vmatprep.subr.mxu0 0.0
      %1008 = vmatpush1.msra.mxu0 0.0
      %1009 = vmatprep.subr.mxu0 0.0
      %1010 = vmatpush1.msra.mxu0 0.0
      %1011 = vmatprep.subr.mxu0 0.0
      %1012 = vmatpush1.msra.mxu0 0.0
      %1013 = vmatprep.subr.mxu0 0.0
      %1014 = vmatpush1.msra.mxu0 0.0
      %1015 = vmatprep.subr.mxu0 0.0
      %1016 = vmatpush1.msra.mxu0 0.0
      %1017 = vmatprep.subr.mxu0 0.0
      %1018 = vmatpush1.msra.mxu0 0.0
      %1019 = vmatprep.subr.mxu0 0.0
      %1020 = vmatpush1.msra.mxu0 0.0
      %1021 = vmatprep.subr.mxu0 0.0
      %1022 = vmatpush1.msra.mxu0 0.0
      %1023 = vmatprep.subr.mxu0 0.0
      %1024 = vmatpush1.msra.mxu0 0.0
      %1025 = vmatprep.subr.mxu0 0.0
      %1026 = vmatpush1.msra.mxu0 0.0
      %1027 = vmatprep.subr.mxu0 0.0
      %1028 = vmatpush1.msra.mxu0 0.0
      %1029 = vmatprep.subr.mxu0 0.0
      %1030 = vmatpush1.msra.mxu0 0.0
      %1031 = vmatprep.subr.mxu0 0.0
      %1032 = vmatpush1.msra.mxu0 0.0
      %1033 = vmatprep.subr.mxu0 0.0
      %1034 = vmatpush1.msra.mxu0 0.0
      %1035 = vmatprep.subr.mxu0 0.0
      %1036 = vmatpush1.msra.mxu0 0.0
      %1037 = vmatprep.subr.mxu0 0.0
      %1038 = vmatpush1.msra.mxu0 0.0
      %1039 = vmatprep.subr.mxu0 0.0
      %1040 = vmatpush1.msra.mxu0 0.0
      %1041 = vmatprep.subr.mxu0 0.0
      %1042 = vmatpush1.msra.mxu0 0.0
      %1043 = vmatprep.subr.mxu0 0.0
      %1044 = vmatpush1.msra.mxu0 0.0
      %1045 = vmatprep.subr.mxu0 0.0
      %1046 = vmatpush1.msra.mxu0 0.0
      %1047 = vmatprep.subr.mxu0 0.0
      %1048 = vmatpush1.msra.mxu0 0.0
      %1049 = vmatprep.subr.mxu0 0.0
      %1050 = vmatpush1.msra.mxu0 0.0
      %1051 = vmatprep.subr.mxu0 0.0
      %1052 = vmatpush1.msra.mxu0 0.0
      %1053 = vmatprep.subr.mxu0 0.0
      %1054 = vmatpush1.msra.mxu0 0.0
      %1055 = vmatprep.subr.mxu0 0.0
      %1056 = vmatpush1.msra.mxu0 0.0
      %1057 = vmatprep.subr.mxu0 0.0
      %1058 = vmatpush1.msra.mxu0 0.0
      %1059 = vmatprep.subr.mxu0 0.0
      %1060 = vmatpush1.msra.mxu0 0.0
      %1061 = vmatprep.subr.mxu0 0.0
      %1062 = vmatpush1.msra.mxu0 0.0
      %1063 = vmatprep.subr.mxu0 0.0
      %1064 = vmatpush1.msra.mxu0 0.0
      %1065 = vmatprep.subr.mxu0 0.0
      %1066 = vmatpush1.msra.mxu0 0.0
      %1067 = vmatprep.subr.mxu0 0.0
      %1068 = vmatpush1.msra.mxu0 0.0
      %1069 = vmatprep.mubr.f32.mxu0 0.0
      %1070 = vmatmul.mubr.f32.gmra.mrb[0].mxu0 %v1000
      %v1071 = vpop.f32.mrb[0].mxu0
      %v1072 = vadd.f32 0.0, %v1071
      %v1073 = vpop.f32.mrb[0].mxu0
      %1074 = vmatprep.mubr.f32.mxu0 0.0
      %1075 = vmatmul.mubr.f32.gmra.mrb[0].mxu0 %v1003
      %v1076 = vpop.f32.mrb[0].mxu0
      %v1077 = vadd.f32 0.0, %v1076
      %v1078 = vpop.f32.mrb[0].mxu0
      %1079 = vdwg.mxu0
      %vm1080 = vcmask 130048
      %v1081 = vsel %vm1080, %v1072, -inf
      %v1082 = vsel %vm1080, %v1077, -inf
      %v1083 = vmax.f32 %v1081, %v1082
      %v1084 = vrot.slane %v1083, 4
      %v1085 = vmax.f32 %v1083, %v1084
      %v1086 = vrot.slane %v1085, 2
      %v1087 = vmax.f32 %v1085, %v1086
      %v1088 = vrot.slane %v1087, 1
      %v1089 = vmax.f32 %v1087, %v1088
      %v1090 = vsub.f32 %v1072, %v1089
      %v1091 = vsub.f32 %v1077, %v1089
      %v1092 = vmul.f32 %v1090, 1.442695
      %v1093 = vpow.pop %v1092
      %v1094 = vmul.f32 %v1091, 1.442695
      %v1095 = vpow.pop %v1094
      %v1096 = vsel %vm1080, %v1093, 0.0
      %v1097 = vsel %vm1080, %v1095, 0.0
      %v1098 = vadd.f32 %v1096, %v1097
      %v1099 = vrot.slane %v1098, 4
      %v1100 = vadd.f32 %v1098, %v1099
      %v1101 = vrot.slane %v1100, 2
      %v1102 = vadd.f32 %v1100, %v1101
      %v1103 = vrot.slane %v1102, 1
      %v1104 = vadd.f32 %v1102, %v1103
      %v1106 = vsel %vm1080, %v963, 0
      %1108 = vmatprep.subr.mxu0 0.0
      %1109 = vmatpush1.msra.mxu0 %v1093
      %1110 = vmatprep.subr.mxu0 0.0
      %1111 = vmatpush1.msra.mxu0 %v1095
      %1112 = vmatprep.subr.mxu0 0.0
      %1113 = vmatpush1.msra.mxu0 0.0
      %1114 = vmatprep.subr.mxu0 0.0
      %1115 = vmatpush1.msra.mxu0 0.0
      %1116 = vmatprep.subr.mxu0 0.0
      %1117 = vmatpush1.msra.mxu0 0.0
      %1118 = vmatprep.subr.mxu0 0.0
      %1119 = vmatpush1.msra.mxu0 0.0
      %1120 = vmatprep.subr.mxu0 0.0
      %1121 = vmatpush1.msra.mxu0 0.0
      %1122 = vmatprep.subr.mxu0 0.0
      %1123 = vmatpush1.msra.mxu0 0.0
      %1124 = vmatprep.subr.mxu0 0.0
      %1125 = vmatpush1.msra.mxu0 0.0
      %1126 = vmatprep.subr.mxu0 0.0
      %1127 = vmatpush1.msra.mxu0 0.0
      %1128 = vmatprep.subr.mxu0 0.0
      %1129 = vmatpush1.msra.mxu0 0.0
      %1130 = vmatprep.subr.mxu0 0.0
      %1131 = vmatpush1.msra.mxu0 0.0
      %1132 = vmatprep.subr.mxu0 0.0
      %1133 = vmatpush1.msra.mxu0 0.0
      %1134 = vmatprep.subr.mxu0 0.0
      %1135 = vmatpush1.msra.mxu0 0.0
      %1136 = vmatprep.subr.mxu0 0.0
      %1137 = vmatpush1.msra.mxu0 0.0
      %1138 = vmatprep.subr.mxu0 0.0
      %1139 = vmatpush1.msra.mxu0 0.0
      %1140 = vmatprep.subr.mxu0 0.0
      %1141 = vmatpush1.msra.mxu0 0.0
      %1142 = vmatprep.subr.mxu0 0.0
      %1143 = vmatpush1.msra.mxu0 0.0
      %1144 = vmatprep.subr.mxu0 0.0
      %1145 = vmatpush1.msra.mxu0 0.0
      %1146 = vmatprep.subr.mxu0 0.0
      %1147 = vmatpush1.msra.mxu0 0.0
      %1148 = vmatprep.subr.mxu0 0.0
      %1149 = vmatpush1.msra.mxu0 0.0
      %1150 = vmatprep.subr.mxu0 0.0
      %1151 = vmatpush1.msra.mxu0 0.0
      %1152 = vmatprep.subr.mxu0 0.0
      %1153 = vmatpush1.msra.mxu0 0.0
      %1154 = vmatprep.subr.mxu0 0.0
      %1155 = vmatpush1.msra.mxu0 0.0
      %1156 = vmatprep.subr.mxu0 0.0
      %1157 = vmatpush1.msra.mxu0 0.0
      %1158 = vmatprep.subr.mxu0 0.0
      %1159 = vmatpush1.msra.mxu0 0.0
      %1160 = vmatprep.subr.mxu0 0.0
      %1161 = vmatpush1.msra.mxu0 0.0
      %1162 = vmatprep.subr.mxu0 0.0
      %1163 = vmatpush1.msra.mxu0 0.0
      %1164 = vmatprep.subr.mxu0 0.0
      %1165 = vmatpush1.msra.mxu0 0.0
      %1166 = vmatprep.subr.mxu0 0.0
      %1167 = vmatpush1.msra.mxu0 0.0
      %1168 = vmatprep.subr.mxu0 0.0
      %1169 = vmatpush1.msra.mxu0 0.0
      %1170 = vmatprep.subr.mxu0 0.0
      %1171 = vmatpush1.msra.mxu0 0.0
      %1172 = vmatprep.mubr.f32.mxu0 0.0
      %1173 = vmatmul.mubr.f32.gmra.mrb[0].mxu0 %v1106
      %v1174 = vpop.f32.mrb[0].mxu0
      %v1175 = vadd.f32 0.0, %v1174
      %v1176 = vpop.f32.mrb[0].mxu0
      %1177 = vdwg.mxu0
      %v1178 = vrcp.pop %v1104
      %v1179 = vmul.f32 %v1175, %v1178
      %1180 = vst.msk [vmem:[#allocation4] sm:$0xff] %vm1080, %v1179
      %1181 = vxpose.xlu0.b32.start [1/16] %v960, 128
      %1182 = vxpose.xlu0.b32.cont [2/16] 0.0, 128
      %1183 = vxpose.xlu0.b32.cont [3/16] 0.0, 128
      %1184 = vxpose.xlu0.b32.cont [4/16] 0.0, 128
      %1185 = vxpose.xlu0.b32.cont [5/16] 0.0, 128
      %1186 = vxpose.xlu0.b32.cont [6/16] 0.0, 128
      %1187 = vxpose.xlu0.b32.cont [7/16] 0.0, 128
      %1188 = vxpose.xlu0.b32.cont [8/16] 0.0, 128
      %1189 = vxpose.xlu0.b32.cont [9/16] 0.0, 128
      %1190 = vxpose.xlu0.b32.cont [10/16] 0.0, 128
      %1191 = vxpose.xlu0.b32.cont [11/16] 0.0, 128
      %1192 = vxpose.xlu0.b32.cont [12/16] 0.0, 128
      %1193 = vxpose.xlu0.b32.cont [13/16] 0.0, 128
      %1194 = vxpose.xlu0.b32.cont [14/16] 0.0, 128
      %1195 = vxpose.xlu0.b32.cont [15/16] 0.0, 128
      %1196 = vxpose.xlu0.b32.end [16/16] 0.0, 128
      %v1197 = vpop.trf.xlu0
      %v1198 = vpop.trf.xlu0
      %v1199 = vpop.trf.xlu0
      %v1200 = vpop.trf.xlu0
      %v1201 = vpop.trf.xlu0
      %v1202 = vpop.trf.xlu0
      %v1203 = vpop.trf.xlu0
      %v1204 = vpop.trf.xlu0
      %v1205 = vpop.trf.xlu0
      %v1206 = vpop.trf.xlu0
      %v1207 = vpop.trf.xlu0
      %v1208 = vpop.trf.xlu0
      %v1209 = vpop.trf.xlu0
      %v1210 = vpop.trf.xlu0
      %v1211 = vpop.trf.xlu0
      %v1212 = vpop.trf.xlu0
      %v1214 = vsel %vm722, %v1197, 0
      %v1217 = vsel %vm722, %v1198, 0
      %1219 = vmatprep.subr.mxu0 0.0
      %1220 = vmatpush1.msra.mxu0 %v946
      %1221 = vmatprep.subr.mxu0 0.0
      %1222 = vmatpush1.msra.mxu0 0.0
      %1223 = vmatprep.subr.mxu0 0.0
      %1224 = vmatpush1.msra.mxu0 0.0
      %1225 = vmatprep.subr.mxu0 0.0
      %1226 = vmatpush1.msra.mxu0 0.0
      %1227 = vmatprep.subr.mxu0 0.0
      %1228 = vmatpush1.msra.mxu0 0.0
      %1229 = vmatprep.subr.mxu0 0.0
      %1230 = vmatpush1.msra.mxu0 0.0
      %1231 = vmatprep.subr.mxu0 0.0
      %1232 = vmatpush1.msra.mxu0 0.0
      %1233 = vmatprep.subr.mxu0 0.0
      %1234 = vmatpush1.msra.mxu0 0.0
      %1235 = vmatprep.subr.mxu0 0.0
      %1236 = vmatpush1.msra.mxu0 0.0
      %1237 = vmatprep.subr.mxu0 0.0
      %1238 = vmatpush1.msra.mxu0 0.0
      %1239 = vmatprep.subr.mxu0 0.0
      %1240 = vmatpush1.msra.mxu0 0.0
      %1241 = vmatprep.subr.mxu0 0.0
      %1242 = vmatpush1.msra.mxu0 0.0
      %1243 = vmatprep.subr.mxu0 0.0
      %1244 = vmatpush1.msra.mxu0 0.0
      %1245 = vmatprep.subr.mxu0 0.0
      %1246 = vmatpush1.msra.mxu0 0.0
      %1247 = vmatprep.subr.mxu0 0.0
      %1248 = vmatpush1.msra.mxu0 0.0
      %1249 = vmatprep.subr.mxu0 0.0
      %1250 = vmatpush1.msra.mxu0 0.0
      %1251 = vmatprep.subr.mxu0 0.0
      %1252 = vmatpush1.msra.mxu0 0.0
      %1253 = vmatprep.subr.mxu0 0.0
      %1254 = vmatpush1.msra.mxu0 0.0
      %1255 = vmatprep.subr.mxu0 0.0
      %1256 = vmatpush1.msra.mxu0 0.0
      %1257 = vmatprep.subr.mxu0 0.0
      %1258 = vmatpush1.msra.mxu0 0.0
      %1259 = vmatprep.subr.mxu0 0.0
      %1260 = vmatpush1.msra.mxu0 0.0
      %1261 = vmatprep.subr.mxu0 0.0
      %1262 = vmatpush1.msra.mxu0 0.0
      %1263 = vmatprep.subr.mxu0 0.0
      %1264 = vmatpush1.msra.mxu0 0.0
      %1265 = vmatprep.subr.mxu0 0.0
      %1266 = vmatpush1.msra.mxu0 0.0
      %1267 = vmatprep.subr.mxu0 0.0
      %1268 = vmatpush1.msra.mxu0 0.0
      %1269 = vmatprep.subr.mxu0 0.0
      %1270 = vmatpush1.msra.mxu0 0.0
      %1271 = vmatprep.subr.mxu0 0.0
      %1272 = vmatpush1.msra.mxu0 0.0
      %1273 = vmatprep.subr.mxu0 0.0
      %1274 = vmatpush1.msra.mxu0 0.0
      %1275 = vmatprep.subr.mxu0 0.0
      %1276 = vmatpush1.msra.mxu0 0.0
      %1277 = vmatprep.subr.mxu0 0.0
      %1278 = vmatpush1.msra.mxu0 0.0
      %1279 = vmatprep.subr.mxu0 0.0
      %1280 = vmatpush1.msra.mxu0 0.0
      %1281 = vmatprep.subr.mxu0 0.0
      %1282 = vmatpush1.msra.mxu0 0.0
      %1283 = vmatprep.mubr.f32.mxu0 0.0
      %1284 = vmatmul.mubr.f32.gmra.mrb[0].mxu0 %v1214
      %v1285 = vpop.f32.mrb[0].mxu0
      %v1286 = vadd.f32 0.0, %v1285
      %v1287 = vpop.f32.mrb[0].mxu0
      %1288 = vmatprep.mubr.f32.mxu0 0.0
      %1289 = vmatmul.mubr.f32.gmra.mrb[0].mxu0 %v1217
      %v1290 = vpop.f32.mrb[0].mxu0
      %v1291 = vadd.f32 0.0, %v1290
      %v1292 = vpop.f32.mrb[0].mxu0
      %1293 = vdwg.mxu0
      %v1294 = vsel %vm1080, %v1286, -inf
      %v1295 = vsel %vm1080, %v1291, -inf
      %v1296 = vmax.f32 %v1294, %v1295
      %v1297 = vrot.slane %v1296, 4
      %v1298 = vmax.f32 %v1296, %v1297
      %v1299 = vrot.slane %v1298, 2
      %v1300 = vmax.f32 %v1298, %v1299
      %v1301 = vrot.slane %v1300, 1
      %v1302 = vmax.f32 %v1300, %v1301
      %v1303 = vsub.f32 %v1286, %v1302
      %v1304 = vsub.f32 %v1291, %v1302
      %v1305 = vmul.f32 %v1303, 1.442695
      %v1306 = vpow.pop %v1305
      %v1307 = vmul.f32 %v1304, 1.442695
      %v1308 = vpow.pop %v1307
      %v1309 = vsel %vm1080, %v1306, 0.0
      %v1310 = vsel %vm1080, %v1308, 0.0
      %v1311 = vadd.f32 %v1309, %v1310
      %v1312 = vrot.slane %v1311, 4
      %v1313 = vadd.f32 %v1311, %v1312
      %v1314 = vrot.slane %v1313, 2
      %v1315 = vadd.f32 %v1313, %v1314
      %v1316 = vrot.slane %v1315, 1
      %v1317 = vadd.f32 %v1315, %v1316
      %v1319 = vsel %vm1080, %v964, 0
      %1321 = vmatprep.subr.mxu0 0.0
      %1322 = vmatpush1.msra.mxu0 %v1306
      %1323 = vmatprep.subr.mxu0 0.0
      %1324 = vmatpush1.msra.mxu0 %v1308
      %1325 = vmatprep.subr.mxu0 0.0
      %1326 = vmatpush1.msra.mxu0 0.0
      %1327 = vmatprep.subr.mxu0 0.0
      %1328 = vmatpush1.msra.mxu0 0.0
      %1329 = vmatprep.subr.mxu0 0.0
      %1330 = vmatpush1.msra.mxu0 0.0
      %1331 = vmatprep.subr.mxu0 0.0
      %1332 = vmatpush1.msra.mxu0 0.0
      %1333 = vmatprep.subr.mxu0 0.0
      %1334 = vmatpush1.msra.mxu0 0.0
      %1335 = vmatprep.subr.mxu0 0.0
      %1336 = vmatpush1.msra.mxu0 0.0
      %1337 = vmatprep.subr.mxu0 0.0
      %1338 = vmatpush1.msra.mxu0 0.0
      %1339 = vmatprep.subr.mxu0 0.0
      %1340 = vmatpush1.msra.mxu0 0.0
      %1341 = vmatprep.subr.mxu0 0.0
      %1342 = vmatpush1.msra.mxu0 0.0
      %1343 = vmatprep.subr.mxu0 0.0
      %1344 = vmatpush1.msra.mxu0 0.0
      %1345 = vmatprep.subr.mxu0 0.0
      %1346 = vmatpush1.msra.mxu0 0.0
      %1347 = vmatprep.subr.mxu0 0.0
      %1348 = vmatpush1.msra.mxu0 0.0
      %1349 = vmatprep.subr.mxu0 0.0
      %1350 = vmatpush1.msra.mxu0 0.0
      %1351 = vmatprep.subr.mxu0 0.0
      %1352 = vmatpush1.msra.mxu0 0.0
      %1353 = vmatprep.subr.mxu0 0.0
      %1354 = vmatpush1.msra.mxu0 0.0
      %1355 = vmatprep.subr.mxu0 0.0
      %1356 = vmatpush1.msra.mxu0 0.0
      %1357 = vmatprep.subr.mxu0 0.0
      %1358 = vmatpush1.msra.mxu0 0.0
      %1359 = vmatprep.subr.mxu0 0.0
      %1360 = vmatpush1.msra.mxu0 0.0
      %1361 = vmatprep.subr.mxu0 0.0
      %1362 = vmatpush1.msra.mxu0 0.0
      %1363 = vmatprep.subr.mxu0 0.0
      %1364 = vmatpush1.msra.mxu0 0.0
      %1365 = vmatprep.subr.mxu0 0.0
      %1366 = vmatpush1.msra.mxu0 0.0
      %1367 = vmatprep.subr.mxu0 0.0
      %1368 = vmatpush1.msra.mxu0 0.0
      %1369 = vmatprep.subr.mxu0 0.0
      %1370 = vmatpush1.msra.mxu0 0.0
      %1371 = vmatprep.subr.mxu0 0.0
      %1372 = vmatpush1.msra.mxu0 0.0
      %1373 = vmatprep.subr.mxu0 0.0
      %1374 = vmatpush1.msra.mxu0 0.0
      %1375 = vmatprep.subr.mxu0 0.0
      %1376 = vmatpush1.msra.mxu0 0.0
      %1377 = vmatprep.subr.mxu0 0.0
      %1378 = vmatpush1.msra.mxu0 0.0
      %1379 = vmatprep.subr.mxu0 0.0
      %1380 = vmatpush1.msra.mxu0 0.0
      %1381 = vmatprep.subr.mxu0 0.0
      %1382 = vmatpush1.msra.mxu0 0.0
      %1383 = vmatprep.subr.mxu0 0.0
      %1384 = vmatpush1.msra.mxu0 0.0
      %1385 = vmatprep.mubr.f32.mxu0 0.0
      %1386 = vmatmul.mubr.f32.gmra.mrb[0].mxu0 %v1319
      %v1387 = vpop.f32.mrb[0].mxu0
      %v1388 = vadd.f32 0.0, %v1387
      %v1389 = vpop.f32.mrb[0].mxu0
      %1390 = vdwg.mxu0
      %v1391 = vrcp.pop %v1317
      %v1392 = vmul.f32 %v1388, %v1391
      %1393 = vst.msk [vmem:[#allocation4 + $0x8] sm:$0xff] %vm1080, %v1392
      %1394 = vxpose.xlu0.b32.start [1/16] %v961, 128
      %1395 = vxpose.xlu0.b32.cont [2/16] 0.0, 128
      %1396 = vxpose.xlu0.b32.cont [3/16] 0.0, 128
      %1397 = vxpose.xlu0.b32.cont [4/16] 0.0, 128
      %1398 = vxpose.xlu0.b32.cont [5/16] 0.0, 128
      %1399 = vxpose.xlu0.b32.cont [6/16] 0.0, 128
      %1400 = vxpose.xlu0.b32.cont [7/16] 0.0, 128
      %1401 = vxpose.xlu0.b32.cont [8/16] 0.0, 128
      %1402 = vxpose.xlu0.b32.cont [9/16] 0.0, 128
      %1403 = vxpose.xlu0.b32.cont [10/16] 0.0, 128
      %1404 = vxpose.xlu0.b32.cont [11/16] 0.0, 128
      %1405 = vxpose.xlu0.b32.cont [12/16] 0.0, 128
      %1406 = vxpose.xlu0.b32.cont [13/16] 0.0, 128
      %1407 = vxpose.xlu0.b32.cont [14/16] 0.0, 128
      %1408 = vxpose.xlu0.b32.cont [15/16] 0.0, 128
      %1409 = vxpose.xlu0.b32.end [16/16] 0.0, 128
      %v1410 = vpop.trf.xlu0
      %v1411 = vpop.trf.xlu0
      %v1412 = vpop.trf.xlu0
      %v1413 = vpop.trf.xlu0
      %v1414 = vpop.trf.xlu0
      %v1415 = vpop.trf.xlu0
      %v1416 = vpop.trf.xlu0
      %v1417 = vpop.trf.xlu0
      %v1418 = vpop.trf.xlu0
      %v1419 = vpop.trf.xlu0
      %v1420 = vpop.trf.xlu0
      %v1421 = vpop.trf.xlu0
      %v1422 = vpop.trf.xlu0
      %v1423 = vpop.trf.xlu0
      %v1424 = vpop.trf.xlu0
      %v1425 = vpop.trf.xlu0
      %v1427 = vsel %vm722, %v1410, 0
      %v1430 = vsel %vm722, %v1411, 0
      %1432 = vmatprep.subr.mxu0 0.0
      %1433 = vmatpush1.msra.mxu0 %v951
      %1434 = vmatprep.subr.mxu0 0.0
      %1435 = vmatpush1.msra.mxu0 0.0
      %1436 = vmatprep.subr.mxu0 0.0
      %1437 = vmatpush1.msra.mxu0 0.0
      %1438 = vmatprep.subr.mxu0 0.0
      %1439 = vmatpush1.msra.mxu0 0.0
      %1440 = vmatprep.subr.mxu0 0.0
      %1441 = vmatpush1.msra.mxu0 0.0
      %1442 = vmatprep.subr.mxu0 0.0
      %1443 = vmatpush1.msra.mxu0 0.0
      %1444 = vmatprep.subr.mxu0 0.0
      %1445 = vmatpush1.msra.mxu0 0.0
      %1446 = vmatprep.subr.mxu0 0.0
      %1447 = vmatpush1.msra.mxu0 0.0
      %1448 = vmatprep.subr.mxu0 0.0
      %1449 = vmatpush1.msra.mxu0 0.0
      %1450 = vmatprep.subr.mxu0 0.0
      %1451 = vmatpush1.msra.mxu0 0.0
      %1452 = vmatprep.subr.mxu0 0.0
      %1453 = vmatpush1.msra.mxu0 0.0
      %1454 = vmatprep.subr.mxu0 0.0
      %1455 = vmatpush1.msra.mxu0 0.0
      %1456 = vmatprep.subr.mxu0 0.0
      %1457 = vmatpush1.msra.mxu0 0.0
      %1458 = vmatprep.subr.mxu0 0.0
      %1459 = vmatpush1.msra.mxu0 0.0
      %1460 = vmatprep.subr.mxu0 0.0
      %1461 = vmatpush1.msra.mxu0 0.0
      %1462 = vmatprep.subr.mxu0 0.0
      %1463 = vmatpush1.msra.mxu0 0.0
      %1464 = vmatprep.subr.mxu0 0.0
      %1465 = vmatpush1.msra.mxu0 0.0
      %1466 = vmatprep.subr.mxu0 0.0
      %1467 = vmatpush1.msra.mxu0 0.0
      %1468 = vmatprep.subr.mxu0 0.0
      %1469 = vmatpush1.msra.mxu0 0.0
      %1470 = vmatprep.subr.mxu0 0.0
      %1471 = vmatpush1.msra.mxu0 0.0
      %1472 = vmatprep.subr.mxu0 0.0
      %1473 = vmatpush1.msra.mxu0 0.0
      %1474 = vmatprep.subr.mxu0 0.0
      %1475 = vmatpush1.msra.mxu0 0.0
      %1476 = vmatprep.subr.mxu0 0.0
      %1477 = vmatpush1.msra.mxu0 0.0
      %1478 = vmatprep.subr.mxu0 0.0
      %1479 = vmatpush1.msra.mxu0 0.0
      %1480 = vmatprep.subr.mxu0 0.0
      %1481 = vmatpush1.msra.mxu0 0.0
      %1482 = vmatprep.subr.mxu0 0.0
      %1483 = vmatpush1.msra.mxu0 0.0
      %1484 = vmatprep.subr.mxu0 0.0
      %1485 = vmatpush1.msra.mxu0 0.0
      %1486 = vmatprep.subr.mxu0 0.0
      %1487 = vmatpush1.msra.mxu0 0.0
      %1488 = vmatprep.subr.mxu0 0.0
      %1489 = vmatpush1.msra.mxu0 0.0
      %1490 = vmatprep.subr.mxu0 0.0
      %1491 = vmatpush1.msra.mxu0 0.0
      %1492 = vmatprep.subr.mxu0 0.0
      %1493 = vmatpush1.msra.mxu0 0.0
      %1494 = vmatprep.subr.mxu0 0.0
      %1495 = vmatpush1.msra.mxu0 0.0
      %1496 = vmatprep.mubr.f32.mxu0 0.0
      %1497 = vmatmul.mubr.f32.gmra.mrb[0].mxu0 %v1427
      %v1498 = vpop.f32.mrb[0].mxu0
      %v1499 = vadd.f32 0.0, %v1498
      %v1500 = vpop.f32.mrb[0].mxu0
      %1501 = vmatprep.mubr.f32.mxu0 0.0
      %1502 = vmatmul.mubr.f32.gmra.mrb[0].mxu0 %v1430
      %v1503 = vpop.f32.mrb[0].mxu0
      %v1504 = vadd.f32 0.0, %v1503
      %v1505 = vpop.f32.mrb[0].mxu0
      %1506 = vdwg.mxu0
      %v1507 = vsel %vm1080, %v1499, -inf
      %v1508 = vsel %vm1080, %v1504, -inf
      %v1509 = vmax.f32 %v1507, %v1508
      %v1510 = vrot.slane %v1509, 4
      %v1511 = vmax.f32 %v1509, %v1510
      %v1512 = vrot.slane %v1511, 2
      %v1513 = vmax.f32 %v1511, %v1512
      %v1514 = vrot.slane %v1513, 1
      %v1515 = vmax.f32 %v1513, %v1514
      %v1516 = vsub.f32 %v1499, %v1515
      %v1517 = vsub.f32 %v1504, %v1515
      %v1518 = vmul.f32 %v1516, 1.442695
      %v1519 = vpow.pop %v1518
      %v1520 = vmul.f32 %v1517, 1.442695
      %v1521 = vpow.pop %v1520
      %v1522 = vsel %vm1080, %v1519, 0.0
      %v1523 = vsel %vm1080, %v1521, 0.0
      %v1524 = vadd.f32 %v1522, %v1523
      %v1525 = vrot.slane %v1524, 4
      %v1526 = vadd.f32 %v1524, %v1525
      %v1527 = vrot.slane %v1526, 2
      %v1528 = vadd.f32 %v1526, %v1527
      %v1529 = vrot.slane %v1528, 1
      %v1530 = vadd.f32 %v1528, %v1529
      %v1532 = vsel %vm1080, %v965, 0
      %1534 = vmatprep.subr.mxu0 0.0
      %1535 = vmatpush1.msra.mxu0 %v1519
      %1536 = vmatprep.subr.mxu0 0.0
      %1537 = vmatpush1.msra.mxu0 %v1521
      %1538 = vmatprep.subr.mxu0 0.0
      %1539 = vmatpush1.msra.mxu0 0.0
      %1540 = vmatprep.subr.mxu0 0.0
      %1541 = vmatpush1.msra.mxu0 0.0
      %1542 = vmatprep.subr.mxu0 0.0
      %1543 = vmatpush1.msra.mxu0 0.0
      %1544 = vmatprep.subr.mxu0 0.0
      %1545 = vmatpush1.msra.mxu0 0.0
      %1546 = vmatprep.subr.mxu0 0.0
      %1547 = vmatpush1.msra.mxu0 0.0
      %1548 = vmatprep.subr.mxu0 0.0
      %1549 = vmatpush1.msra.mxu0 0.0
      %1550 = vmatprep.subr.mxu0 0.0
      %1551 = vmatpush1.msra.mxu0 0.0
      %1552 = vmatprep.subr.mxu0 0.0
      %1553 = vmatpush1.msra.mxu0 0.0
      %1554 = vmatprep.subr.mxu0 0.0
      %1555 = vmatpush1.msra.mxu0 0.0
      %1556 = vmatprep.subr.mxu0 0.0
      %1557 = vmatpush1.msra.mxu0 0.0
      %1558 = vmatprep.subr.mxu0 0.0
      %1559 = vmatpush1.msra.mxu0 0.0
      %1560 = vmatprep.subr.mxu0 0.0
      %1561 = vmatpush1.msra.mxu0 0.0
      %1562 = vmatprep.subr.mxu0 0.0
      %1563 = vmatpush1.msra.mxu0 0.0
      %1564 = vmatprep.subr.mxu0 0.0
      %1565 = vmatpush1.msra.mxu0 0.0
      %1566 = vmatprep.subr.mxu0 0.0
      %1567 = vmatpush1.msra.mxu0 0.0
      %1568 = vmatprep.subr.mxu0 0.0
      %1569 = vmatpush1.msra.mxu0 0.0
      %1570 = vmatprep.subr.mxu0 0.0
      %1571 = vmatpush1.msra.mxu0 0.0
      %1572 = vmatprep.subr.mxu0 0.0
      %1573 = vmatpush1.msra.mxu0 0.0
      %1574 = vmatprep.subr.mxu0 0.0
      %1575 = vmatpush1.msra.mxu0 0.0
      %1576 = vmatprep.subr.mxu0 0.0
      %1577 = vmatpush1.msra.mxu0 0.0
      %1578 = vmatprep.subr.mxu0 0.0
      %1579 = vmatpush1.msra.mxu0 0.0
      %1580 = vmatprep.subr.mxu0 0.0
      %1581 = vmatpush1.msra.mxu0 0.0
      %1582 = vmatprep.subr.mxu0 0.0
      %1583 = vmatpush1.msra.mxu0 0.0
      %1584 = vmatprep.subr.mxu0 0.0
      %1585 = vmatpush1.msra.mxu0 0.0
      %1586 = vmatprep.subr.mxu0 0.0
      %1587 = vmatpush1.msra.mxu0 0.0
      %1588 = vmatprep.subr.mxu0 0.0
      %1589 = vmatpush1.msra.mxu0 0.0
      %1590 = vmatprep.subr.mxu0 0.0
      %1591 = vmatpush1.msra.mxu0 0.0
      %1592 = vmatprep.subr.mxu0 0.0
      %1593 = vmatpush1.msra.mxu0 0.0
      %1594 = vmatprep.subr.mxu0 0.0
      %1595 = vmatpush1.msra.mxu0 0.0
      %1596 = vmatprep.subr.mxu0 0.0
      %1597 = vmatpush1.msra.mxu0 0.0
      %1598 = vmatprep.mubr.f32.mxu0 0.0
      %1599 = vmatmul.mubr.f32.gmra.mrb[0].mxu0 %v1532
      %v1600 = vpop.f32.mrb[0].mxu0
      %v1601 = vadd.f32 0.0, %v1600
      %v1602 = vpop.f32.mrb[0].mxu0
      %1603 = vdwg.mxu0
      %v1604 = vrcp.pop %v1530
      %v1605 = vmul.f32 %v1601, %v1604
      %1606 = vst.msk [vmem:[#allocation4 + $0x10] sm:$0xff] %vm1080, %v1605
      %1607 = vxpose.xlu0.b32.start [1/16] %v962, 128
      %1608 = vxpose.xlu0.b32.cont [2/16] 0.0, 128
      %1609 = vxpose.xlu0.b32.cont [3/16] 0.0, 128
      %1610 = vxpose.xlu0.b32.cont [4/16] 0.0, 128
      %1611 = vxpose.xlu0.b32.cont [5/16] 0.0, 128
      %1612 = vxpose.xlu0.b32.cont [6/16] 0.0, 128
      %1613 = vxpose.xlu0.b32.cont [7/16] 0.0, 128
      %1614 = vxpose.xlu0.b32.cont [8/16] 0.0, 128
      %1615 = vxpose.xlu0.b32.cont [9/16] 0.0, 128
      %1616 = vxpose.xlu0.b32.cont [10/16] 0.0, 128
      %1617 = vxpose.xlu0.b32.cont [11/16] 0.0, 128
      %1618 = vxpose.xlu0.b32.cont [12/16] 0.0, 128
      %1619 = vxpose.xlu0.b32.cont [13/16] 0.0, 128
      %1620 = vxpose.xlu0.b32.cont [14/16] 0.0, 128
      %1621 = vxpose.xlu0.b32.cont [15/16] 0.0, 128
      %1622 = vxpose.xlu0.b32.end [16/16] 0.0, 128
      %v1623 = vpop.trf.xlu0
      %v1624 = vpop.trf.xlu0
      %v1625 = vpop.trf.xlu0
      %v1626 = vpop.trf.xlu0
      %v1627 = vpop.trf.xlu0
      %v1628 = vpop.trf.xlu0
      %v1629 = vpop.trf.xlu0
      %v1630 = vpop.trf.xlu0
      %v1631 = vpop.trf.xlu0
      %v1632 = vpop.trf.xlu0
      %v1633 = vpop.trf.xlu0
      %v1634 = vpop.trf.xlu0
      %v1635 = vpop.trf.xlu0
      %v1636 = vpop.trf.xlu0
      %v1637 = vpop.trf.xlu0
      %v1638 = vpop.trf.xlu0
      %v1640 = vsel %vm722, %v1623, 0
      %v1643 = vsel %vm722, %v1624, 0
      %1645 = vmatprep.subr.mxu0 0.0
      %1646 = vmatpush1.msra.mxu0 %v956
      %1647 = vmatprep.subr.mxu0 0.0
      %1648 = vmatpush1.msra.mxu0 0.0
      %1649 = vmatprep.subr.mxu0 0.0
      %1650 = vmatpush1.msra.mxu0 0.0
      %1651 = vmatprep.subr.mxu0 0.0
      %1652 = vmatpush1.msra.mxu0 0.0
      %1653 = vmatprep.subr.mxu0 0.0
      %1654 = vmatpush1.msra.mxu0 0.0
      %1655 = vmatprep.subr.mxu0 0.0
      %1656 = vmatpush1.msra.mxu0 0.0
      %1657 = vmatprep.subr.mxu0 0.0
      %1658 = vmatpush1.msra.mxu0 0.0
      %1659 = vmatprep.subr.mxu0 0.0
      %1660 = vmatpush1.msra.mxu0 0.0
      %1661 = vmatprep.subr.mxu0 0.0
      %1662 = vmatpush1.msra.mxu0 0.0
      %1663 = vmatprep.subr.mxu0 0.0
      %1664 = vmatpush1.msra.mxu0 0.0
      %1665 = vmatprep.subr.mxu0 0.0
      %1666 = vmatpush1.msra.mxu0 0.0
      %1667 = vmatprep.subr.mxu0 0.0
      %1668 = vmatpush1.msra.mxu0 0.0
      %1669 = vmatprep.subr.mxu0 0.0
      %1670 = vmatpush1.msra.mxu0 0.0
      %1671 = vmatprep.subr.mxu0 0.0
      %1672 = vmatpush1.msra.mxu0 0.0
      %1673 = vmatprep.subr.mxu0 0.0
      %1674 = vmatpush1.msra.mxu0 0.0
      %1675 = vmatprep.subr.mxu0 0.0
      %1676 = vmatpush1.msra.mxu0 0.0
      %1677 = vmatprep.subr.mxu0 0.0
      %1678 = vmatpush1.msra.mxu0 0.0
      %1679 = vmatprep.subr.mxu0 0.0
      %1680 = vmatpush1.msra.mxu0 0.0
      %1681 = vmatprep.subr.mxu0 0.0
      %1682 = vmatpush1.msra.mxu0 0.0
      %1683 = vmatprep.subr.mxu0 0.0
      %1684 = vmatpush1.msra.mxu0 0.0
      %1685 = vmatprep.subr.mxu0 0.0
      %1686 = vmatpush1.msra.mxu0 0.0
      %1687 = vmatprep.subr.mxu0 0.0
      %1688 = vmatpush1.msra.mxu0 0.0
      %1689 = vmatprep.subr.mxu0 0.0
      %1690 = vmatpush1.msra.mxu0 0.0
      %1691 = vmatprep.subr.mxu0 0.0
      %1692 = vmatpush1.msra.mxu0 0.0
      %1693 = vmatprep.subr.mxu0 0.0
      %1694 = vmatpush1.msra.mxu0 0.0
      %1695 = vmatprep.subr.mxu0 0.0
      %1696 = vmatpush1.msra.mxu0 0.0
      %1697 = vmatprep.subr.mxu0 0.0
      %1698 = vmatpush1.msra.mxu0 0.0
      %1699 = vmatprep.subr.mxu0 0.0
      %1700 = vmatpush1.msra.mxu0 0.0
      %1701 = vmatprep.subr.mxu0 0.0
      %1702 = vmatpush1.msra.mxu0 0.0
      %1703 = vmatprep.subr.mxu0 0.0
      %1704 = vmatpush1.msra.mxu0 0.0
      %1705 = vmatprep.subr.mxu0 0.0
      %1706 = vmatpush1.msra.mxu0 0.0
      %1707 = vmatprep.subr.mxu0 0.0
      %1708 = vmatpush1.msra.mxu0 0.0
      %1709 = vmatprep.mubr.f32.mxu0 0.0
      %1710 = vmatmul.mubr.f32.gmra.mrb[0].mxu0 %v1640
      %v1711 = vpop.f32.mrb[0].mxu0
      %v1712 = vadd.f32 0.0, %v1711
      %v1713 = vpop.f32.mrb[0].mxu0
      %1714 = vmatprep.mubr.f32.mxu0 0.0
      %1715 = vmatmul.mubr.f32.gmra.mrb[0].mxu0 %v1643
      %v1716 = vpop.f32.mrb[0].mxu0
      %v1717 = vadd.f32 0.0, %v1716
      %v1718 = vpop.f32.mrb[0].mxu0
      %1719 = vdwg.mxu0
      %v1720 = vsel %vm1080, %v1712, -inf
      %v1721 = vsel %vm1080, %v1717, -inf
      %v1722 = vmax.f32 %v1720, %v1721
      %v1723 = vrot.slane %v1722, 4
      %v1724 = vmax.f32 %v1722, %v1723
      %v1725 = vrot.slane %v1724, 2
      %v1726 = vmax.f32 %v1724, %v1725
      %v1727 = vrot.slane %v1726, 1
      %v1728 = vmax.f32 %v1726, %v1727
      %v1729 = vsub.f32 %v1712, %v1728
      %v1730 = vsub.f32 %v1717, %v1728
      %v1731 = vmul.f32 %v1729, 1.442695
      %v1732 = vpow.pop %v1731
      %v1733 = vmul.f32 %v1730, 1.442695
      %v1734 = vpow.pop %v1733
      %v1735 = vsel %vm1080, %v1732, 0.0
      %v1736 = vsel %vm1080, %v1734, 0.0
      %v1737 = vadd.f32 %v1735, %v1736
      %v1738 = vrot.slane %v1737, 4
      %v1739 = vadd.f32 %v1737, %v1738
      %v1740 = vrot.slane %v1739, 2
      %v1741 = vadd.f32 %v1739, %v1740
      %v1742 = vrot.slane %v1741, 1
      %v1743 = vadd.f32 %v1741, %v1742
      %v1745 = vsel %vm1080, %v966, 0
      %1747 = vmatprep.subr.mxu0 0.0
      %1748 = vmatpush1.msra.mxu0 %v1732
      %1749 = vmatprep.subr.mxu0 0.0
      %1750 = vmatpush1.msra.mxu0 %v1734
      %1751 = vmatprep.subr.mxu0 0.0
      %1752 = vmatpush1.msra.mxu0 0.0
      %1753 = vmatprep.subr.mxu0 0.0
      %1754 = vmatpush1.msra.mxu0 0.0
      %1755 = vmatprep.subr.mxu0 0.0
      %1756 = vmatpush1.msra.mxu0 0.0
      %1757 = vmatprep.subr.mxu0 0.0
      %1758 = vmatpush1.msra.mxu0 0.0
      %1759 = vmatprep.subr.mxu0 0.0
      %1760 = vmatpush1.msra.mxu0 0.0
      %1761 = vmatprep.subr.mxu0 0.0
      %1762 = vmatpush1.msra.mxu0 0.0
      %1763 = vmatprep.subr.mxu0 0.0
      %1764 = vmatpush1.msra.mxu0 0.0
      %1765 = vmatprep.subr.mxu0 0.0
      %1766 = vmatpush1.msra.mxu0 0.0
      %1767 = vmatprep.subr.mxu0 0.0
      %1768 = vmatpush1.msra.mxu0 0.0
      %1769 = vmatprep.subr.mxu0 0.0
      %1770 = vmatpush1.msra.mxu0 0.0
      %1771 = vmatprep.subr.mxu0 0.0
      %1772 = vmatpush1.msra.mxu0 0.0
      %1773 = vmatprep.subr.mxu0 0.0
      %1774 = vmatpush1.msra.mxu0 0.0
      %1775 = vmatprep.subr.mxu0 0.0
      %1776 = vmatpush1.msra.mxu0 0.0
      %1777 = vmatprep.subr.mxu0 0.0
      %1778 = vmatpush1.msra.mxu0 0.0
      %1779 = vmatprep.subr.mxu0 0.0
      %1780 = vmatpush1.msra.mxu0 0.0
      %1781 = vmatprep.subr.mxu0 0.0
      %1782 = vmatpush1.msra.mxu0 0.0
      %1783 = vmatprep.subr.mxu0 0.0
      %1784 = vmatpush1.msra.mxu0 0.0
      %1785 = vmatprep.subr.mxu0 0.0
      %1786 = vmatpush1.msra.mxu0 0.0
      %1787 = vmatprep.subr.mxu0 0.0
      %1788 = vmatpush1.msra.mxu0 0.0
      %1789 = vmatprep.subr.mxu0 0.0
      %1790 = vmatpush1.msra.mxu0 0.0
      %1791 = vmatprep.subr.mxu0 0.0
      %1792 = vmatpush1.msra.mxu0 0.0
      %1793 = vmatprep.subr.mxu0 0.0
      %1794 = vmatpush1.msra.mxu0 0.0
      %1795 = vmatprep.subr.mxu0 0.0
      %1796 = vmatpush1.msra.mxu0 0.0
      %1797 = vmatprep.subr.mxu0 0.0
      %1798 = vmatpush1.msra.mxu0 0.0
      %1799 = vmatprep.subr.mxu0 0.0
      %1800 = vmatpush1.msra.mxu0 0.0
      %1801 = vmatprep.subr.mxu0 0.0
      %1802 = vmatpush1.msra.mxu0 0.0
      %1803 = vmatprep.subr.mxu0 0.0
      %1804 = vmatpush1.msra.mxu0 0.0
      %1805 = vmatprep.subr.mxu0 0.0
      %1806 = vmatpush1.msra.mxu0 0.0
      %1807 = vmatprep.subr.mxu0 0.0
      %1808 = vmatpush1.msra.mxu0 0.0
      %1809 = vmatprep.subr.mxu0 0.0
      %1810 = vmatpush1.msra.mxu0 0.0
      %1811 = vmatprep.mubr.f32.mxu0 0.0
      %1812 = vmatmul.mubr.f32.gmra.mrb[0].mxu0 %v1745
      %v1813 = vpop.f32.mrb[0].mxu0
      %v1814 = vadd.f32 0.0, %v1813
      %v1815 = vpop.f32.mrb[0].mxu0
      %1816 = vdwg.mxu0
      %v1817 = vrcp.pop %v1743
      %v1818 = vmul.f32 %v1814, %v1817
      %1819 = vst.msk [vmem:[#allocation4 + $0x18] sm:$0xff] %vm1080, %v1818
      %v1820 = vld [vmem:[%s7] sm:$0xff]
      %v1821 = vld [vmem:[%s7 + $0x8] sm:$0xff]
      %v1822 = vld [vmem:[%s7 + $0x10] sm:$0xff]
      %v1823 = vld [vmem:[%s7 + $0x18] sm:$0xff]
      %v1824 = vld [vmem:[#allocation4] sm:$0xff]
      %v1825 = vld [vmem:[#allocation4 + $0x8] sm:$0xff]
      %v1826 = vld [vmem:[#allocation4 + $0x10] sm:$0xff]
      %v1827 = vld [vmem:[#allocation4 + $0x18] sm:$0xff]
      %v1828 = vld [vmem:[%s8] sm:$0xff]
      %v1829 = vld [vmem:[%s8 + $0x8] sm:$0xff]
      %v1830 = vld [vmem:[%s8 + $0x10] sm:$0xff]
      %v1831 = vld [vmem:[%s8 + $0x18] sm:$0xff]
      %1833 = vset.pattern.permute.xlu0 0
      %1834 = vperm.xlu0 %1833, %v1828
      %v1835 = vpop.permute.xlu0 %1834
      %1838 = vset.pattern.permute.xlu0 0
      %1839 = vperm.xlu0 %1838, %v1829
      %v1840 = vpop.permute.xlu0 %1839
      %1843 = vset.pattern.permute.xlu0 0
      %1844 = vperm.xlu0 %1843, %v1830
      %v1845 = vpop.permute.xlu0 %1844
      %1848 = vset.pattern.permute.xlu0 0
      %1849 = vperm.xlu0 %1848, %v1831
      %v1850 = vpop.permute.xlu0 %1849
      %vm1852 = vcmask 261120
      %v1854 = vsel %vm1852, %v1820, 0
      %v1857 = vsel %vm1852, %v1821, 0
      %v1860 = vsel %vm1852, %v1822, 0
      %v1863 = vsel %vm1852, %v1823, 0
      %1865 = vmatprep.subr.mxu0 0.0
      %1866 = vmatpush1.msra.mxu0 %v1824
      %1867 = vmatprep.subr.mxu0 0.0
      %1868 = vmatpush1.msra.mxu0 %v1825
      %1869 = vmatprep.subr.mxu0 0.0
      %1870 = vmatpush1.msra.mxu0 %v1826
      %1871 = vmatprep.subr.mxu0 0.0
      %1872 = vmatpush1.msra.mxu0 %v1827
      %1873 = vmatprep.subr.mxu0 0.0
      %1874 = vmatpush1.msra.mxu0 0.0
      %1875 = vmatprep.subr.mxu0 0.0
      %1876 = vmatpush1.msra.mxu0 0.0
      %1877 = vmatprep.subr.mxu0 0.0
      %1878 = vmatpush1.msra.mxu0 0.0
      %1879 = vmatprep.subr.mxu0 0.0
      %1880 = vmatpush1.msra.mxu0 0.0
      %1881 = vmatprep.subr.mxu0 0.0
      %1882 = vmatpush1.msra.mxu0 0.0
      %1883 = vmatprep.subr.mxu0 0.0
      %1884 = vmatpush1.msra.mxu0 0.0
      %1885 = vmatprep.subr.mxu0 0.0
      %1886 = vmatpush1.msra.mxu0 0.0
      %1887 = vmatprep.subr.mxu0 0.0
      %1888 = vmatpush1.msra.mxu0 0.0
      %1889 = vmatprep.subr.mxu0 0.0
      %1890 = vmatpush1.msra.mxu0 0.0
      %1891 = vmatprep.subr.mxu0 0.0
      %1892 = vmatpush1.msra.mxu0 0.0
      %1893 = vmatprep.subr.mxu0 0.0
      %1894 = vmatpush1.msra.mxu0 0.0
      %1895 = vmatprep.subr.mxu0 0.0
      %1896 = vmatpush1.msra.mxu0 0.0
      %1897 = vmatprep.subr.mxu0 0.0
      %1898 = vmatpush1.msra.mxu0 0.0
      %1899 = vmatprep.subr.mxu0 0.0
      %1900 = vmatpush1.msra.mxu0 0.0
      %1901 = vmatprep.subr.mxu0 0.0
      %1902 = vmatpush1.msra.mxu0 0.0
      %1903 = vmatprep.subr.mxu0 0.0
      %1904 = vmatpush1.msra.mxu0 0.0
      %1905 = vmatprep.subr.mxu0 0.0
      %1906 = vmatpush1.msra.mxu0 0.0
      %1907 = vmatprep.subr.mxu0 0.0
      %1908 = vmatpush1.msra.mxu0 0.0
      %1909 = vmatprep.subr.mxu0 0.0
      %1910 = vmatpush1.msra.mxu0 0.0
      %1911 = vmatprep.subr.mxu0 0.0
      %1912 = vmatpush1.msra.mxu0 0.0
      %1913 = vmatprep.subr.mxu0 0.0
      %1914 = vmatpush1.msra.mxu0 0.0
      %1915 = vmatprep.subr.mxu0 0.0
      %1916 = vmatpush1.msra.mxu0 0.0
      %1917 = vmatprep.subr.mxu0 0.0
      %1918 = vmatpush1.msra.mxu0 0.0
      %1919 = vmatprep.subr.mxu0 0.0
      %1920 = vmatpush1.msra.mxu0 0.0
      %1921 = vmatprep.subr.mxu0 0.0
      %1922 = vmatpush1.msra.mxu0 0.0
      %1923 = vmatprep.subr.mxu0 0.0
      %1924 = vmatpush1.msra.mxu0 0.0
      %1925 = vmatprep.subr.mxu0 0.0
      %1926 = vmatpush1.msra.mxu0 0.0
      %1927 = vmatprep.subr.mxu0 0.0
      %1928 = vmatpush1.msra.mxu0 0.0
      %1929 = vmatprep.mubr.f32.mxu0 0.0
      %1930 = vmatmul.mubr.f32.gmra.mrb[0].mxu0 %v1854
      %v1931 = vpop.f32.mrb[0].mxu0
      %v1932 = vadd.f32 %v1835, %v1931
      %v1933 = vpop.f32.mrb[0].mxu0
      %1934 = vmatprep.mubr.f32.mxu0 0.0
      %1935 = vmatmul.mubr.f32.gmra.mrb[0].mxu0 %v1857
      %v1936 = vpop.f32.mrb[0].mxu0
      %v1937 = vadd.f32 %v1840, %v1936
      %v1938 = vpop.f32.mrb[0].mxu0
      %1939 = vmatprep.mubr.f32.mxu0 0.0
      %1940 = vmatmul.mubr.f32.gmra.mrb[0].mxu0 %v1860
      %v1941 = vpop.f32.mrb[0].mxu0
      %v1942 = vadd.f32 %v1845, %v1941
      %v1943 = vpop.f32.mrb[0].mxu0
      %1944 = vmatprep.mubr.f32.mxu0 0.0
      %1945 = vmatmul.mubr.f32.gmra.mrb[0].mxu0 %v1863
      %v1946 = vpop.f32.mrb[0].mxu0
      %v1947 = vadd.f32 %v1850, %v1946
      %v1948 = vpop.f32.mrb[0].mxu0
      %1949 = vdwg.mxu0
      %1950 = vst.msk [vmem:[%s349] sm:$0xff] %vm1080, %v1932
      %1951 = vst.msk [vmem:[%s349 + $0x8] sm:$0xff] %vm1080, %v1937
      %1952 = vst.msk [vmem:[%s349 + $0x10] sm:$0xff] %vm1080, %v1942
      %1953 = vst.msk [vmem:[%s349 + $0x18] sm:$0xff] %vm1080, %v1947
      %p1954 = scmp.lt.s32.totalorder %s24, 1
      %s1955 = scalar_select %p1954, %s24, 1
      %p1956 = scmp.lt.s32.totalorder %s25, 0
      %s1957 = scalar_select %p1956, %s25, 0
      %s1958 = smul.addr %s1955, 4
      %s1959 = sadd.s32 %s1957, %s1958
      %s1960 = smul.addr %s1959, 8
      %s1961 = scalar_lea.vmem %s9, %s1960
      // Predicated region
      $region61: #{tpu_custom_call.1} parent=55 // pred_check
        %p1962 = pneg %p246
      $region62: #{tpu_custom_call.1} parent=55 // pred_check_branch
        %1964 = sbr.rel (%p1962) target = $region64
      $region63: #{tpu_custom_call.1} parent=55 // pred_region
        _
      $region64: #{tpu_custom_call.1} parent=55 // pred_fallthru
        _
    $region56: #{tpu_custom_call.1} parent=5 // pred_fallthru
      _
    %p1965 = scmp.le.s32.totalorder 2, %s15
    // Predicated region
    $region65: #{tpu_custom_call.1} parent=5 // pred_check
      %p1966 = pneg %p1965
    $region66: #{tpu_custom_call.1} parent=5 // pred_check_branch
      %1968 = sbr.rel (%p1966) target = $region68
    $region67: #{tpu_custom_call.1} parent=5 // pred_region
      %s1969 = ssub.s32 %s15, 2
      // Predicated region
      $region69: #{tpu_custom_call.1} parent=67 // pred_check
        %p1970 = pneg %p252
      $region70: #{tpu_custom_call.1} parent=67 // pred_check_branch
        %1972 = sbr.rel (%p1970) target = $region72
      $region71: #{tpu_custom_call.1} parent=67 // pred_region
        %p1973 = scmp.lt.s32.totalorder %s26, 1
        %s1974 = scalar_select %p1973, %s26, 1
        %p1975 = scmp.lt.s32.totalorder %s27, 0
        %s1976 = scalar_select %p1975, %s27, 0
        %s1977 = smul.addr %s1974, 4
        %s1978 = sadd.s32 %s1976, %s1977
        %s1979 = smul.addr %s1978, 8
        %s1980 = scalar_lea.vmem %s9, %s1979
      $region72: #{tpu_custom_call.1} parent=67 // pred_fallthru
        _
    $region68: #{tpu_custom_call.1} parent=5 // pred_fallthru
      _
  $region6: #{tpu_custom_call.1} parent=0 // loop_footer
    %s19 = sadd.s32 1, %s15
  $region7: #{tpu_custom_call.1} parent=0 // loop_footer_branch
    %14 = sbr.rel target = $region3
  $region8: #{tpu_custom_call.1} parent=0 // loop_exit
    _

</llo_original>
